<compile_context>
chip_gen: v5e
topology: v5e:2x2
jax: 0.10.0
libtpu: 0.0.40
codegen_flags: <defaults>
</compile_context>

<pallas_src>
import functools

import jax
import jax.numpy as jnp
from jax import lax
from jax.experimental import pallas as pl
from jax.experimental.pallas import tpu as pltpu


# ----------------------------- Pallas kernel -------------------------------

def _gemm_act_kernel(a_ref, b_ref, o_ref, *, leaky_slope):
    """o = act(A @ B). Whole K resident -> no k axis / accumulator scratch."""
    acc = jnp.dot(a_ref[...], b_ref[...], preferred_element_type=jnp.float32)
    if leaky_slope is not None:
        acc = jnp.where(acc > 0.0, acc, jnp.float32(leaky_slope) * acc)
    o_ref[...] = acc.astype(o_ref.dtype)


def pallas_gemm(a, b, *, leaky_slope=None, out_dtype=jnp.float32):
    """act(A @ B) with A:(M,K), B:(K,N), N % 128 == 0 (lane-dense output).

    K is kept fully resident (it is at most 16*Cin ~ 2048 for this model),
    so the grid is 1-D over M. Tiles are chosen as large as possible
    (<= 1024 rows) while keeping a single A block within 8 MiB so the
    double-buffered working set fits every TPU generation's scoped VMEM.
    """
    M0, K = a.shape
    K2, N = b.shape
    assert K == K2 and N % 128 == 0

    # Pad M to a multiple of 16 (covers bf16 sublane quantum); keeps tiling
    # robust for arbitrary batch sizes instead of a single whole-M tile.
    pad_rows = (-M0) % 16
    if pad_rows:
        a = jnp.pad(a, ((0, pad_rows), (0, 0)))
    M = M0 + pad_rows

    itemsize = jnp.dtype(a.dtype).itemsize
    tm = M  # fallback (never hit after the 16-row padding above)
    for cand in (1024, 512, 256, 128, 64, 32, 16):
        if M % cand == 0 and cand * K * itemsize <= (8 << 20):
            tm = cand
            break
    grid = (M // tm,)

    out = pl.pallas_call(
        functools.partial(_gemm_act_kernel, leaky_slope=leaky_slope),
        out_shape=jax.ShapeDtypeStruct((M, N), out_dtype),
        grid_spec=pltpu.PrefetchScalarGridSpec(
            num_scalar_prefetch=0,
            grid=grid,
            in_specs=[pl.BlockSpec((tm, K), lambda i: (i, 0)),
                      pl.BlockSpec((K, N), lambda i: (0, 0))],
            out_specs=pl.BlockSpec((tm, N), lambda i: (i, 0))),
        compiler_params=pltpu.CompilerParams(
            dimension_semantics=("parallel",),
            vmem_limit_bytes=48 * 1024 * 1024),
    )(a, b)
    return out[:M0] if pad_rows else out


# ------------------------------ JAX glue ------------------------------------

def _im2col_nhwc(x, ksize, stride, pad):
    """x:(N,H,W,C) -> A:(N*Ho*Wo, ksize*ksize*C), patch order (kh, kw, c)."""
    n, h, w, c = x.shape
    if pad:
        x = jnp.pad(x, ((0, 0), (pad, pad), (pad, pad), (0, 0)))
    hp = h + 2 * pad
    ho = (hp - ksize) // stride + 1
    wo = ho
    cols = []
    for kh in range(ksize):
        for kw in range(ksize):
            cols.append(x[:, kh:kh + stride * (ho - 1) + 1:stride,
                           kw:kw + stride * (wo - 1) + 1:stride, :])
    patches = jnp.concatenate(cols, axis=-1)            # (N, Ho, Wo, K*K*C)
    return patches.reshape(n * ho * wo, ksize * ksize * c), ho, wo


def critic_128_forward(x_nchw, weights, *, leaky_slope=0.2):
    """x:(N, nc, 128, 128) -> (N, 1, 1, 1), matching Critic_128.forward."""
    n_layers = len(weights)
    # Single layout change at the entry; the net then stays in NHWC/GEMM layout.
    x = jnp.transpose(x_nchw, (0, 2, 3, 1)).astype(jnp.bfloat16)
    n = x.shape[0]
    for i, w in enumerate(weights):
        last = (i == n_layers - 1)
        stride, pad = (1, 0) if last else (2, 1)
        cout = w.shape[0]

        a, ho, wo = _im2col_nhwc(x, 4, stride, pad)
        # PyTorch Conv2d weight (Cout, Cin, KH, KW) -> (KH*KW*Cin, Cout),
        # row ordering matches the (kh, kw, c) patch layout above.
        wm = jnp.transpose(w, (2, 3, 1, 0)).reshape(-1, cout)
        npad = ((cout + 127) // 128) * 128              # lane-dense output
        if npad != cout:
            wm = jnp.pad(wm, ((0, 0), (0, npad - cout)))

        y = pallas_gemm(a.astype(jnp.bfloat16), wm.astype(jnp.bfloat16),
                        leaky_slope=None if last else leaky_slope,
                        out_dtype=jnp.float32 if last else jnp.bfloat16)
        if last:
            return y[:, :cout].reshape(n, ho, wo, cout).transpose(0, 3, 1, 2)
        x = y.reshape(n, ho, wo, npad)[:, :, :, :cout]
    raise AssertionError("no layers")


def _reference_forward(x_nchw, weights, *, leaky_slope=0.2):
    """Pure-JAX f32 reference (lax.conv), for a correctness sanity check."""
    x = x_nchw
    n_layers = len(weights)
    for i, w in enumerate(weights):
        last = (i == n_layers - 1)
        stride, pad = (1, 0) if last else (2, 1)
        x = lax.conv_general_dilated(
            x, w, window_strides=(stride, stride),
            padding=((pad, pad), (pad, pad)),
            dimension_numbers=("NCHW", "OIHW", "NCHW"),
            precision=lax.Precision.HIGHEST)
        if not last:
            x = jnp.where(x > 0, x, leaky_slope * x)
    return x


# --------------------------------- main --------------------------------------

if __name__ == "__main__":
    key = jax.random.PRNGKey(0)
    # Spatial size must be 128 for Critic_128 (final 4x4 valid conv on a 4x4
    # map); keep everything else small.
    nc, ndf, batch = 3, 8, 2
    channels = [nc, ndf, ndf * 2, ndf * 4, ndf * 8, ndf * 16, 1]

    keys = jax.random.split(key, 7)
    weights = []
    for i in range(6):
        cin, cout = channels[i], channels[i + 1]
        scale = (16 * cin) ** -0.5          # keeps activations O(1) for the check
        weights.append(scale * jax.random.normal(keys[i], (cout, cin, 4, 4),
                                                 jnp.float32))
    x = jax.random.normal(keys[6], (batch, nc, 128, 128), jnp.float32)

    out = jax.block_until_ready(critic_128_forward(x, weights))
    assert out.shape == (batch, 1, 1, 1), out.shape
    assert bool(jnp.all(jnp.isfinite(out)))

    # Sanity check vs the f32 reference (kernel path is bf16 -> loose tolerance).
    ref = _reference_forward(x, weights)
    rel_err = float(jnp.max(jnp.abs(out - ref)) / (jnp.max(jnp.abs(ref)) + 1e-6))
    assert rel_err < 0.1, rel_err
    print("KERNEL_OK")
</pallas_src>

<mosaic_0001>
module attributes {stable_mosaic.version = 11 : i64} {
  func.func @_gemm_act_kernel(%arg0: i32, %arg1: memref<1024x48xbf16, #tpu.memory_space<vmem>>, %arg2: memref<48x128xbf16, #tpu.memory_space<vmem>>, %arg3: memref<1024x128xbf16, #tpu.memory_space<vmem>>) attributes {dimension_semantics = [#tpu.dimension_semantics<parallel>], iteration_bounds = array<i64: 8>, scalar_prefetch = 0 : i64, scratch_operands = 0 : i64, tpu.core_type = #tpu.core_type<tc>, window_params = [{transform_indices = @transform_0, window_bounds = array<i64: 1024, 48>}, {pipeline_mode = #tpu.pipeline_mode<synchronous>, transform_indices = @transform_1, window_bounds = array<i64: 48, 128>}, {transform_indices = @transform_2, window_bounds = array<i64: 1024, 128>}]} {
    %c0 = arith.constant 0 : index
    %c0_0 = arith.constant 0 : index
    %0 = vector.load %arg1[%c0, %c0_0] : memref<1024x48xbf16, #tpu.memory_space<vmem>>, vector<1024x48xbf16>
    %c0_1 = arith.constant 0 : index
    %c0_2 = arith.constant 0 : index
    %1 = vector.load %arg2[%c0_1, %c0_2] : memref<48x128xbf16, #tpu.memory_space<vmem>>, vector<48x128xbf16>
    %cst = arith.constant dense<0.000000e+00> : vector<1024x128xf32>
    %2 = tpu.matmul %0, %1, %cst {dimension_numbers = #tpu.dot_dimension_numbers<[1], [0], [0], [1], [0, 0, 1, 1], [], []>} : vector<1024x48xbf16>, vector<48x128xbf16>, vector<1024x128xf32> -> vector<1024x128xf32>
    %cst_3 = arith.constant 0.000000e+00 : f32
    %3 = vector.broadcast %cst_3 : f32 to vector<1024x128xf32>
    %4 = arith.cmpf ogt, %2, %3 : vector<1024x128xf32>
    %cst_4 = arith.constant 2.000000e-01 : f32
    %5 = vector.broadcast %cst_4 : f32 to vector<1024x128xf32>
    %6 = arith.mulf %5, %2 : vector<1024x128xf32>
    %7 = arith.select %4, %2, %6 : vector<1024x128xi1>, vector<1024x128xf32>
    %8 = arith.truncf %7 : vector<1024x128xf32> to vector<1024x128xbf16>
    %c0_5 = arith.constant 0 : index
    %c0_6 = arith.constant 0 : index
    %9 = vector.load %arg3[%c0_5, %c0_6] : memref<1024x128xbf16, #tpu.memory_space<vmem>>, vector<1024x128xbf16>
    tpu.vector_store %arg3[%c0_5, %c0_6], %8 {strides = array<i32>} : memref<1024x128xbf16, #tpu.memory_space<vmem>>, vector<1024x128xbf16>,
    return
  }
  func.func @transform_0(%arg0: i32) -> (i32, i32) {
    %c0_i32 = arith.constant 0 : i32
    %c0_i32_0 = arith.constant 0 : i32
    return %arg0, %c0_i32 : i32, i32
  }
  func.func @transform_1(%arg0: i32) -> (i32, i32) {
    %c0_i32 = arith.constant 0 : i32
    %c0_i32_0 = arith.constant 0 : i32
    %c0_i32_1 = arith.constant 0 : i32
    return %c0_i32, %c0_i32_0 : i32, i32
  }
  func.func @transform_2(%arg0: i32) -> (i32, i32) {
    %c0_i32 = arith.constant 0 : i32
    %c0_i32_0 = arith.constant 0 : i32
    return %arg0, %c0_i32 : i32, i32
  }
}

</mosaic_0001>

<llo_original>
// kernel: tpu_custom_call.1
$region0: #{tpu_custom_call.1}
  #allocation0 [shape = 'u32[]', space=smem, size = 0x4, offset = 0x4, fixed_abs, tag = 'smem constant byte address 0x4 - core index']
  #allocation1 [shape = 'u32[72,128]{1,0:T(1,128)}', space=vmem, size = 0x9000, scoped, tag = 'internal scratch']
  %s0 = inlined_call_operand.vmem [shape: bf16[8192,48], index: 0, kind: input, shape index: {}]
  %s1 = inlined_call_operand.vmem [shape: bf16[48,128], index: 1, kind: input, shape index: {}]
  %s2 = inlined_call_operand.hbm [shape: bf16[8192,128], index: 2, kind: output, shape index: {}]
  %s3 = sld [smem:[#allocation0]]
  $region41: #{tpu_custom_call.1} parent=0
    _
  %s5 = ssub.s32 1, %s3
  %s6 = scalar_select 0, %s5, %s3
  $region1: #{tpu_custom_call.1} parent=0
    #allocation2 [shape = 'u8[524288]{0}', space=vmem, size = 0x80000, scoped, tag = 'output window, operand 0']
    #allocation3 [shape = 's32[2]{0}', space=sflag, size = 0x8, scoped, tag = 'scoped memory for tpu_custom_call.1']
    %7 = vsyncpa [#allocation3], 0
    %s8 = scalar_lea.sflag [#allocation3], 1
    %9 = vsyncpa %s8, 0
    loop: start=0, step=1, limit=10
    $region2: #{tpu_custom_call.1} parent=1 // loop_pre_header
      _
    $region3: #{tpu_custom_call.1} parent=1 // loop_header
      %s11 = sphi 0, %s15
      %p12 = scmp.ge.s32.totalorder %s11, 10
      %s21 = sphi 0, %s23
      %s24 = sphi 0, %s21
      %s25 = sphi 0, %s24
      %s41 = sphi 0, %s25
      %s45 = sphi 0, %s45
      %s47 = sphi 0, %s45
      %s48 = sphi 0, %s47
      %s62 = sphi 0, %s48
      %s68 = sphi 0, %s70
      %s71 = sphi 0, %s68
      %s72 = sphi 0, %s71
      %s88 = sphi 0, %s72
    $region4: #{tpu_custom_call.1} parent=1 // loop_header_branch
      %14 = sbr.rel (%p12) target = $region8
    $region5: #{tpu_custom_call.1} parent=1 // loop_body
      %s16 = ssub.s32 %s11, 1
      %s17 = ssub.s32 %s11, 2
      %s18 = sadd.s32 %s11, 1
      %s19 = ssub.s32 %s11, %s18
      %p20 = scmp.eq.s32.totalorder %s19, 0
      %s22 = sadd.s32 %s21, 1
      %s23 = scalar_select %p20, %s21, %s22
      %p26 = pneg %p20
      %p27 = scmp.eq.s32.totalorder %s11, 7
      %p28 = por %p26, %p27
      %p29 = scmp.ne.s32.totalorder %s21, %s24
      %p30 = scmp.eq.s32.totalorder %s11, 0
      %p31 = por %p29, %p30
      %p32 = scmp.ne.s32.totalorder %s21, %s24
      %p33 = scmp.eq.s32.totalorder %s16, 7
      %p34 = por %p32, %p33
      %p35 = scmp.ne.s32.totalorder %s24, %s25
      %p36 = scmp.eq.s32.totalorder %s16, 0
      %p37 = por %p35, %p36
      %p38 = scmp.ne.s32.totalorder %s24, %s25
      %p39 = scmp.eq.s32.totalorder %s17, 7
      %p40 = por %p38, %p39
      %p42 = scmp.ne.s32.totalorder %s25, %s41
      %p43 = scmp.eq.s32.totalorder %s17, 0
      %p44 = por %p42, %p43
      %s46 = sadd.s32 %s45, 1
      %p49 = scmp.eq.s32.totalorder %s11, 7
      %p50 = scmp.ne.s32.totalorder %s45, %s47
      %p51 = scmp.eq.s32.totalorder %s11, 0
      %p52 = por %p50, %p51
      %p53 = scmp.ne.s32.totalorder %s45, %s47
      %p54 = scmp.eq.s32.totalorder %s16, 7
      %p55 = por %p53, %p54
      %p56 = scmp.ne.s32.totalorder %s47, %s48
      %p57 = scmp.eq.s32.totalorder %s16, 0
      %p58 = por %p56, %p57
      %p59 = scmp.ne.s32.totalorder %s47, %s48
      %p60 = scmp.eq.s32.totalorder %s17, 7
      %p61 = por %p59, %p60
      %p63 = scmp.ne.s32.totalorder %s48, %s62
      %p64 = scmp.eq.s32.totalorder %s17, 0
      %p65 = por %p63, %p64
      %s66 = ssub.s32 %s11, %s18
      %p67 = scmp.eq.s32.totalorder %s66, 0
      %s69 = sadd.s32 %s68, 1
      %s70 = scalar_select %p67, %s68, %s69
      %p73 = pneg %p67
      %p74 = scmp.eq.s32.totalorder %s11, 7
      %p75 = por %p73, %p74
      %p76 = scmp.ne.s32.totalorder %s68, %s71
      %p77 = scmp.eq.s32.totalorder %s11, 0
      %p78 = por %p76, %p77
      %p79 = scmp.ne.s32.totalorder %s68, %s71
      %p80 = scmp.eq.s32.totalorder %s16, 7
      %p81 = por %p79, %p80
      %p82 = scmp.ne.s32.totalorder %s71, %s72
      %p83 = scmp.eq.s32.totalorder %s16, 0
      %p84 = por %p82, %p83
      %p85 = scmp.ne.s32.totalorder %s71, %s72
      %p86 = scmp.eq.s32.totalorder %s17, 7
      %p87 = por %p85, %p86
      %p89 = scmp.ne.s32.totalorder %s72, %s88
      %p90 = scmp.eq.s32.totalorder %s17, 0
      %p91 = por %p89, %p90
      %p92 = scmp.le.s32.totalorder 1, %s11
      %p93 = scmp.lt.s32.totalorder %s11, 9
      %p94 = pnand %p92, %p93
      %p95 = pneg %p94
      // Predicated region
      $region9: #{tpu_custom_call.1} parent=5 // pred_check
        _
      $region10: #{tpu_custom_call.1} parent=5 // pred_check_branch
        %97 = sbr.rel (%p94) target = $region12
      $region11: #{tpu_custom_call.1} parent=5 // pred_region
        %s98 = ssub.s32 %s11, 1
        // Predicated region
        $region13: #{tpu_custom_call.1} parent=11 // pred_check
          %p99 = pneg %p58
        $region14: #{tpu_custom_call.1} parent=11 // pred_check_branch
          %101 = sbr.rel (%p99) target = $region16
        $region15: #{tpu_custom_call.1} parent=11 // pred_region
          _
        $region16: #{tpu_custom_call.1} parent=11 // pred_fallthru
          _
      $region12: #{tpu_custom_call.1} parent=5 // pred_fallthru
        _
      %p102 = scmp.lt.s32.totalorder %s11, 8
      // Predicated region
      $region17: #{tpu_custom_call.1} parent=5 // pred_check
        %p103 = pneg %p102
      $region18: #{tpu_custom_call.1} parent=5 // pred_check_branch
        %105 = sbr.rel (%p103) target = $region20
      $region19: #{tpu_custom_call.1} parent=5 // pred_region
        // Predicated region
        $region21: #{tpu_custom_call.1} parent=19 // pred_check
          %p106 = pneg %p31
        $region22: #{tpu_custom_call.1} parent=19 // pred_check_branch
          %108 = sbr.rel (%p106) target = $region24
        $region23: #{tpu_custom_call.1} parent=19 // pred_region
          %s109 = smul.u32 128, %s11
          %p110 = scmp.lt.s32.totalorder %s109, 1023
          %s111 = scalar_select %p110, %s109, 1023
          %s112 = smul.addr %s111, 4
          %s113 = scalar_lea.vmem %s0, %s112
          %s114 = smul.u32 128, %s11
        $region24: #{tpu_custom_call.1} parent=19 // pred_fallthru
          _
      $region20: #{tpu_custom_call.1} parent=5 // pred_fallthru
        _
      %p115 = scmp.le.s32.totalorder 1, %s11
      %p116 = scmp.lt.s32.totalorder %s11, 9
      %p117 = pnand %p115, %p116
      %p118 = pneg %p117
      // Predicated region
      $region25: #{tpu_custom_call.1} parent=5 // pred_check
        _
      $region26: #{tpu_custom_call.1} parent=5 // pred_check_branch
        %120 = sbr.rel (%p117) target = $region28
      $region27: #{tpu_custom_call.1} parent=5 // pred_region
        %s121 = ssub.s32 %s11, 1
        %s122 = smul.u32 128, %s16
        %p123 = scmp.lt.s32.totalorder %s122, 1023
        %s124 = scalar_select %p123, %s122, 1023
        %s125 = smul.addr %s124, 4
        %s126 = scalar_lea.vmem %s0, %s125
        %p127 = pneg %p37
        %p128 = pneg %p34
        %p129 = pneg %p58
        %p130 = pneg %p55
        %p131 = pneg %p84
        %p132 = pneg %p81
        %s133 = sand.u32 %s71, 1
        %s134 = scalar_lea.sflag [#allocation3], %s133
        %s135 = sand.u32 %s71, 1
        %s136 = smul.addr %s135, 512
        %s137 = scalar_lea.vmem [#allocation2], %s136
        %s138 = smul.u32 128, %s16
        %p139 = scmp.lt.s32.totalorder %s138, 1023
        %s140 = scalar_select %p139, %s138, 1023
        %s141 = smul.addr %s140, 4
        %s142 = scalar_lea.vmem %s0, %s141
        %s143 = smul.u32 128, %s16
        %s144 = smul.u32 128, %s16
        %v146 = vld [vmem:[%s142] sm:$0xf]
        %v147 = vld [vmem:[%s142 + $0x4] sm:$0xf]
        %v148 = vld [vmem:[%s142 + $0x8] sm:$0xf]
        %v149 = vld [vmem:[%s142 + $0xc] sm:$0xf]
        %v150 = vld [vmem:[%s142 + $0x10] sm:$0xf]
        %v151 = vld [vmem:[%s142 + $0x14] sm:$0xf]
        %v152 = vld [vmem:[%s142 + $0x18] sm:$0xf]
        %v153 = vld [vmem:[%s142 + $0x1c] sm:$0xf]
        %v154 = vld [vmem:[%s142 + $0x20] sm:$0xf]
        %v155 = vld [vmem:[%s142 + $0x24] sm:$0xf]
        %v156 = vld [vmem:[%s142 + $0x28] sm:$0xf]
        %v157 = vld [vmem:[%s142 + $0x2c] sm:$0xf]
        %v158 = vld [vmem:[%s142 + $0x30] sm:$0xf]
        %v159 = vld [vmem:[%s142 + $0x34] sm:$0xf]
        %v160 = vld [vmem:[%s142 + $0x38] sm:$0xf]
        %v161 = vld [vmem:[%s142 + $0x3c] sm:$0xf]
        %v162 = vld [vmem:[%s142 + $0x40] sm:$0xf]
        %v163 = vld [vmem:[%s142 + $0x44] sm:$0xf]
        %v164 = vld [vmem:[%s142 + $0x48] sm:$0xf]
        %v165 = vld [vmem:[%s142 + $0x4c] sm:$0xf]
        %v166 = vld [vmem:[%s142 + $0x50] sm:$0xf]
        %v167 = vld [vmem:[%s142 + $0x54] sm:$0xf]
        %v168 = vld [vmem:[%s142 + $0x58] sm:$0xf]
        %v169 = vld [vmem:[%s142 + $0x5c] sm:$0xf]
        %v170 = vld [vmem:[%s142 + $0x60] sm:$0xf]
        %v171 = vld [vmem:[%s142 + $0x64] sm:$0xf]
        %v172 = vld [vmem:[%s142 + $0x68] sm:$0xf]
        %v173 = vld [vmem:[%s142 + $0x6c] sm:$0xf]
        %v174 = vld [vmem:[%s142 + $0x70] sm:$0xf]
        %v175 = vld [vmem:[%s142 + $0x74] sm:$0xf]
        %v176 = vld [vmem:[%s142 + $0x78] sm:$0xf]
        %v177 = vld [vmem:[%s142 + $0x7c] sm:$0xf]
        %v178 = vld [vmem:[%s142 + $0x80] sm:$0xf]
        %v179 = vld [vmem:[%s142 + $0x84] sm:$0xf]
        %v180 = vld [vmem:[%s142 + $0x88] sm:$0xf]
        %v181 = vld [vmem:[%s142 + $0x8c] sm:$0xf]
        %v182 = vld [vmem:[%s142 + $0x90] sm:$0xf]
        %v183 = vld [vmem:[%s142 + $0x94] sm:$0xf]
        %v184 = vld [vmem:[%s142 + $0x98] sm:$0xf]
        %v185 = vld [vmem:[%s142 + $0x9c] sm:$0xf]
        %v186 = vld [vmem:[%s142 + $0xa0] sm:$0xf]
        %v187 = vld [vmem:[%s142 + $0xa4] sm:$0xf]
        %v188 = vld [vmem:[%s142 + $0xa8] sm:$0xf]
        %v189 = vld [vmem:[%s142 + $0xac] sm:$0xf]
        %v190 = vld [vmem:[%s142 + $0xb0] sm:$0xf]
        %v191 = vld [vmem:[%s142 + $0xb4] sm:$0xf]
        %v192 = vld [vmem:[%s142 + $0xb8] sm:$0xf]
        %v193 = vld [vmem:[%s142 + $0xbc] sm:$0xf]
        %v194 = vld [vmem:[%s142 + $0xc0] sm:$0xf]
        %v195 = vld [vmem:[%s142 + $0xc4] sm:$0xf]
        %v196 = vld [vmem:[%s142 + $0xc8] sm:$0xf]
        %v197 = vld [vmem:[%s142 + $0xcc] sm:$0xf]
        %v198 = vld [vmem:[%s142 + $0xd0] sm:$0xf]
        %v199 = vld [vmem:[%s142 + $0xd4] sm:$0xf]
        %v200 = vld [vmem:[%s142 + $0xd8] sm:$0xf]
        %v201 = vld [vmem:[%s142 + $0xdc] sm:$0xf]
        %v202 = vld [vmem:[%s142 + $0xe0] sm:$0xf]
        %v203 = vld [vmem:[%s142 + $0xe4] sm:$0xf]
        %v204 = vld [vmem:[%s142 + $0xe8] sm:$0xf]
        %v205 = vld [vmem:[%s142 + $0xec] sm:$0xf]
        %v206 = vld [vmem:[%s142 + $0xf0] sm:$0xf]
        %v207 = vld [vmem:[%s142 + $0xf4] sm:$0xf]
        %v208 = vld [vmem:[%s142 + $0xf8] sm:$0xf]
        %v209 = vld [vmem:[%s142 + $0xfc] sm:$0xf]
        %v210 = vld [vmem:[%s142 + $0x100] sm:$0xf]
        %v211 = vld [vmem:[%s142 + $0x104] sm:$0xf]
        %v212 = vld [vmem:[%s142 + $0x108] sm:$0xf]
        %v213 = vld [vmem:[%s142 + $0x10c] sm:$0xf]
        %v214 = vld [vmem:[%s142 + $0x110] sm:$0xf]
        %v215 = vld [vmem:[%s142 + $0x114] sm:$0xf]
        %v216 = vld [vmem:[%s142 + $0x118] sm:$0xf]
        %v217 = vld [vmem:[%s142 + $0x11c] sm:$0xf]
        %v218 = vld [vmem:[%s142 + $0x120] sm:$0xf]
        %v219 = vld [vmem:[%s142 + $0x124] sm:$0xf]
        %v220 = vld [vmem:[%s142 + $0x128] sm:$0xf]
        %v221 = vld [vmem:[%s142 + $0x12c] sm:$0xf]
        %v222 = vld [vmem:[%s142 + $0x130] sm:$0xf]
        %v223 = vld [vmem:[%s142 + $0x134] sm:$0xf]
        %v224 = vld [vmem:[%s142 + $0x138] sm:$0xf]
        %v225 = vld [vmem:[%s142 + $0x13c] sm:$0xf]
        %v226 = vld [vmem:[%s142 + $0x140] sm:$0xf]
        %v227 = vld [vmem:[%s142 + $0x144] sm:$0xf]
        %v228 = vld [vmem:[%s142 + $0x148] sm:$0xf]
        %v229 = vld [vmem:[%s142 + $0x14c] sm:$0xf]
        %v230 = vld [vmem:[%s142 + $0x150] sm:$0xf]
        %v231 = vld [vmem:[%s142 + $0x154] sm:$0xf]
        %v232 = vld [vmem:[%s142 + $0x158] sm:$0xf]
        %v233 = vld [vmem:[%s142 + $0x15c] sm:$0xf]
        %v234 = vld [vmem:[%s142 + $0x160] sm:$0xf]
        %v235 = vld [vmem:[%s142 + $0x164] sm:$0xf]
        %v236 = vld [vmem:[%s142 + $0x168] sm:$0xf]
        %v237 = vld [vmem:[%s142 + $0x16c] sm:$0xf]
        %v238 = vld [vmem:[%s142 + $0x170] sm:$0xf]
        %v239 = vld [vmem:[%s142 + $0x174] sm:$0xf]
        %v240 = vld [vmem:[%s142 + $0x178] sm:$0xf]
        %v241 = vld [vmem:[%s142 + $0x17c] sm:$0xf]
        %v242 = vld [vmem:[%s142 + $0x180] sm:$0xf]
        %v243 = vld [vmem:[%s142 + $0x184] sm:$0xf]
        %v244 = vld [vmem:[%s142 + $0x188] sm:$0xf]
        %v245 = vld [vmem:[%s142 + $0x18c] sm:$0xf]
        %v246 = vld [vmem:[%s142 + $0x190] sm:$0xf]
        %v247 = vld [vmem:[%s142 + $0x194] sm:$0xf]
        %v248 = vld [vmem:[%s142 + $0x198] sm:$0xf]
        %v249 = vld [vmem:[%s142 + $0x19c] sm:$0xf]
        %v250 = vld [vmem:[%s142 + $0x1a0] sm:$0xf]
        %v251 = vld [vmem:[%s142 + $0x1a4] sm:$0xf]
        %v252 = vld [vmem:[%s142 + $0x1a8] sm:$0xf]
        %v253 = vld [vmem:[%s142 + $0x1ac] sm:$0xf]
        %v254 = vld [vmem:[%s142 + $0x1b0] sm:$0xf]
        %v255 = vld [vmem:[%s142 + $0x1b4] sm:$0xf]
        %v256 = vld [vmem:[%s142 + $0x1b8] sm:$0xf]
        %v257 = vld [vmem:[%s142 + $0x1bc] sm:$0xf]
        %v258 = vld [vmem:[%s142 + $0x1c0] sm:$0xf]
        %v259 = vld [vmem:[%s142 + $0x1c4] sm:$0xf]
        %v260 = vld [vmem:[%s142 + $0x1c8] sm:$0xf]
        %v261 = vld [vmem:[%s142 + $0x1cc] sm:$0xf]
        %v262 = vld [vmem:[%s142 + $0x1d0] sm:$0xf]
        %v263 = vld [vmem:[%s142 + $0x1d4] sm:$0xf]
        %v264 = vld [vmem:[%s142 + $0x1d8] sm:$0xf]
        %v265 = vld [vmem:[%s142 + $0x1dc] sm:$0xf]
        %v266 = vld [vmem:[%s142 + $0x1e0] sm:$0xf]
        %v267 = vld [vmem:[%s142 + $0x1e4] sm:$0xf]
        %v268 = vld [vmem:[%s142 + $0x1e8] sm:$0xf]
        %v269 = vld [vmem:[%s142 + $0x1ec] sm:$0xf]
        %v270 = vld [vmem:[%s142 + $0x1f0] sm:$0xf]
        %v271 = vld [vmem:[%s142 + $0x1f4] sm:$0xf]
        %v272 = vld [vmem:[%s142 + $0x1f8] sm:$0xf]
        %v273 = vld [vmem:[%s142 + $0x1fc] sm:$0xf]
        %v274 = vld [vmem:[%s1] sm:$0xf]
        %v275 = vld [vmem:[%s1 + $0x4] sm:$0xf]
        %v276 = vld [vmem:[%s1 + $0x8] sm:$0xf]
        %v277 = vld [vmem:[%s1 + $0xc] sm:$0xf]
        %v278 = vld [vmem:[%s1 + $0x10] sm:$0xf]
        %v279 = vld [vmem:[%s1 + $0x14] sm:$0xf]
        %v408 = vunpack.c.l.b16 %v146
        %v409 = vunpack.c.l.b16 %v147
        %v410 = vunpack.c.l.b16 %v148
        %v411 = vunpack.c.l.b16 %v149
        %v412 = vunpack.c.l.b16 %v150
        %v413 = vunpack.c.l.b16 %v151
        %v414 = vunpack.c.l.b16 %v152
        %v415 = vunpack.c.l.b16 %v153
        %v416 = vunpack.c.l.b16 %v154
        %v417 = vunpack.c.l.b16 %v155
        %v418 = vunpack.c.l.b16 %v156
        %v419 = vunpack.c.l.b16 %v157
        %v420 = vunpack.c.l.b16 %v158
        %v421 = vunpack.c.l.b16 %v159
        %v422 = vunpack.c.l.b16 %v160
        %v423 = vunpack.c.l.b16 %v161
        %v424 = vunpack.c.l.b16 %v162
        %v425 = vunpack.c.l.b16 %v163
        %v426 = vunpack.c.l.b16 %v164
        %v427 = vunpack.c.l.b16 %v165
        %v428 = vunpack.c.l.b16 %v166
        %v429 = vunpack.c.l.b16 %v167
        %v430 = vunpack.c.l.b16 %v168
        %v431 = vunpack.c.l.b16 %v169
        %v432 = vunpack.c.l.b16 %v170
        %v433 = vunpack.c.l.b16 %v171
        %v434 = vunpack.c.l.b16 %v172
        %v435 = vunpack.c.l.b16 %v173
        %v436 = vunpack.c.l.b16 %v174
        %v437 = vunpack.c.l.b16 %v175
        %v438 = vunpack.c.l.b16 %v176
        %v439 = vunpack.c.l.b16 %v177
        %v440 = vunpack.c.l.b16 %v178
        %v441 = vunpack.c.l.b16 %v179
        %v442 = vunpack.c.l.b16 %v180
        %v443 = vunpack.c.l.b16 %v181
        %v444 = vunpack.c.l.b16 %v182
        %v445 = vunpack.c.l.b16 %v183
        %v446 = vunpack.c.l.b16 %v184
        %v447 = vunpack.c.l.b16 %v185
        %v448 = vunpack.c.l.b16 %v186
        %v449 = vunpack.c.l.b16 %v187
        %v450 = vunpack.c.l.b16 %v188
        %v451 = vunpack.c.l.b16 %v189
        %v452 = vunpack.c.l.b16 %v190
        %v453 = vunpack.c.l.b16 %v191
        %v454 = vunpack.c.l.b16 %v192
        %v455 = vunpack.c.l.b16 %v193
        %v456 = vunpack.c.l.b16 %v194
        %v457 = vunpack.c.l.b16 %v195
        %v458 = vunpack.c.l.b16 %v196
        %v459 = vunpack.c.l.b16 %v197
        %v460 = vunpack.c.l.b16 %v198
        %v461 = vunpack.c.l.b16 %v199
        %v462 = vunpack.c.l.b16 %v200
        %v463 = vunpack.c.l.b16 %v201
        %v464 = vunpack.c.l.b16 %v202
        %v465 = vunpack.c.l.b16 %v203
        %v466 = vunpack.c.l.b16 %v204
        %v467 = vunpack.c.l.b16 %v205
        %v468 = vunpack.c.l.b16 %v206
        %v469 = vunpack.c.l.b16 %v207
        %v470 = vunpack.c.l.b16 %v208
        %v471 = vunpack.c.l.b16 %v209
        %v472 = vunpack.c.l.b16 %v210
        %v473 = vunpack.c.l.b16 %v211
        %v474 = vunpack.c.l.b16 %v212
        %v475 = vunpack.c.l.b16 %v213
        %v476 = vunpack.c.l.b16 %v214
        %v477 = vunpack.c.l.b16 %v215
        %v478 = vunpack.c.l.b16 %v216
        %v479 = vunpack.c.l.b16 %v217
        %v480 = vunpack.c.l.b16 %v218
        %v481 = vunpack.c.l.b16 %v219
        %v482 = vunpack.c.l.b16 %v220
        %v483 = vunpack.c.l.b16 %v221
        %v484 = vunpack.c.l.b16 %v222
        %v485 = vunpack.c.l.b16 %v223
        %v486 = vunpack.c.l.b16 %v224
        %v487 = vunpack.c.l.b16 %v225
        %v488 = vunpack.c.l.b16 %v226
        %v489 = vunpack.c.l.b16 %v227
        %v490 = vunpack.c.l.b16 %v228
        %v491 = vunpack.c.l.b16 %v229
        %v492 = vunpack.c.l.b16 %v230
        %v493 = vunpack.c.l.b16 %v231
        %v494 = vunpack.c.l.b16 %v232
        %v495 = vunpack.c.l.b16 %v233
        %v496 = vunpack.c.l.b16 %v234
        %v497 = vunpack.c.l.b16 %v235
        %v498 = vunpack.c.l.b16 %v236
        %v499 = vunpack.c.l.b16 %v237
        %v500 = vunpack.c.l.b16 %v238
        %v501 = vunpack.c.l.b16 %v239
        %v502 = vunpack.c.l.b16 %v240
        %v503 = vunpack.c.l.b16 %v241
        %v504 = vunpack.c.l.b16 %v242
        %v505 = vunpack.c.l.b16 %v243
        %v506 = vunpack.c.l.b16 %v244
        %v507 = vunpack.c.l.b16 %v245
        %v508 = vunpack.c.l.b16 %v246
        %v509 = vunpack.c.l.b16 %v247
        %v510 = vunpack.c.l.b16 %v248
        %v511 = vunpack.c.l.b16 %v249
        %v512 = vunpack.c.l.b16 %v250
        %v513 = vunpack.c.l.b16 %v251
        %v514 = vunpack.c.l.b16 %v252
        %v515 = vunpack.c.l.b16 %v253
        %v516 = vunpack.c.l.b16 %v254
        %v517 = vunpack.c.l.b16 %v255
        %v518 = vunpack.c.l.b16 %v256
        %v519 = vunpack.c.l.b16 %v257
        %v520 = vunpack.c.l.b16 %v258
        %v521 = vunpack.c.l.b16 %v259
        %v522 = vunpack.c.l.b16 %v260
        %v523 = vunpack.c.l.b16 %v261
        %v524 = vunpack.c.l.b16 %v262
        %v525 = vunpack.c.l.b16 %v263
        %v526 = vunpack.c.l.b16 %v264
        %v527 = vunpack.c.l.b16 %v265
        %v528 = vunpack.c.l.b16 %v266
        %v529 = vunpack.c.l.b16 %v267
        %v530 = vunpack.c.l.b16 %v268
        %v531 = vunpack.c.l.b16 %v269
        %v532 = vunpack.c.l.b16 %v270
        %v533 = vunpack.c.l.b16 %v271
        %v534 = vunpack.c.l.b16 %v272
        %v535 = vunpack.c.l.b16 %v273
        %v536 = vpack.c.b16 %v409, %v408
        %v537 = vpack.c.b16 %v411, %v410
        %v538 = vpack.c.b16 %v413, %v412
        %v539 = vpack.c.b16 %v415, %v414
        %v540 = vpack.c.b16 %v417, %v416
        %v541 = vpack.c.b16 %v419, %v418
        %v542 = vpack.c.b16 %v421, %v420
        %v543 = vpack.c.b16 %v423, %v422
        %v544 = vpack.c.b16 %v425, %v424
        %v545 = vpack.c.b16 %v427, %v426
        %v546 = vpack.c.b16 %v429, %v428
        %v547 = vpack.c.b16 %v431, %v430
        %v548 = vpack.c.b16 %v433, %v432
        %v549 = vpack.c.b16 %v435, %v434
        %v550 = vpack.c.b16 %v437, %v436
        %v551 = vpack.c.b16 %v439, %v438
        %v552 = vpack.c.b16 %v441, %v440
        %v553 = vpack.c.b16 %v443, %v442
        %v554 = vpack.c.b16 %v445, %v444
        %v555 = vpack.c.b16 %v447, %v446
        %v556 = vpack.c.b16 %v449, %v448
        %v557 = vpack.c.b16 %v451, %v450
        %v558 = vpack.c.b16 %v453, %v452
        %v559 = vpack.c.b16 %v455, %v454
        %v560 = vpack.c.b16 %v457, %v456
        %v561 = vpack.c.b16 %v459, %v458
        %v562 = vpack.c.b16 %v461, %v460
        %v563 = vpack.c.b16 %v463, %v462
        %v564 = vpack.c.b16 %v465, %v464
        %v565 = vpack.c.b16 %v467, %v466
        %v566 = vpack.c.b16 %v469, %v468
        %v567 = vpack.c.b16 %v471, %v470
        %v568 = vpack.c.b16 %v473, %v472
        %v569 = vpack.c.b16 %v475, %v474
        %v570 = vpack.c.b16 %v477, %v476
        %v571 = vpack.c.b16 %v479, %v478
        %v572 = vpack.c.b16 %v481, %v480
        %v573 = vpack.c.b16 %v483, %v482
        %v574 = vpack.c.b16 %v485, %v484
        %v575 = vpack.c.b16 %v487, %v486
        %v576 = vpack.c.b16 %v489, %v488
        %v577 = vpack.c.b16 %v491, %v490
        %v578 = vpack.c.b16 %v493, %v492
        %v579 = vpack.c.b16 %v495, %v494
        %v580 = vpack.c.b16 %v497, %v496
        %v581 = vpack.c.b16 %v499, %v498
        %v582 = vpack.c.b16 %v501, %v500
        %v583 = vpack.c.b16 %v503, %v502
        %v584 = vpack.c.b16 %v505, %v504
        %v585 = vpack.c.b16 %v507, %v506
        %v586 = vpack.c.b16 %v509, %v508
        %v587 = vpack.c.b16 %v511, %v510
        %v588 = vpack.c.b16 %v513, %v512
        %v589 = vpack.c.b16 %v515, %v514
        %v590 = vpack.c.b16 %v517, %v516
        %v591 = vpack.c.b16 %v519, %v518
        %v592 = vpack.c.b16 %v521, %v520
        %v593 = vpack.c.b16 %v523, %v522
        %v594 = vpack.c.b16 %v525, %v524
        %v595 = vpack.c.b16 %v527, %v526
        %v596 = vpack.c.b16 %v529, %v528
        %v597 = vpack.c.b16 %v531, %v530
        %v598 = vpack.c.b16 %v533, %v532
        %v599 = vpack.c.b16 %v535, %v534
        %v606 = vunpack.c.l.b16 %v274
        %v607 = vunpack.c.l.b16 %v275
        %v608 = vunpack.c.l.b16 %v276
        %v609 = vunpack.c.l.b16 %v277
        %v610 = vunpack.c.l.b16 %v278
        %v611 = vunpack.c.l.b16 %v279
        %v612 = vpack.c.b16 %v607, %v606
        %v613 = vpack.c.b16 %v609, %v608
        %v614 = vpack.c.b16 %v611, %v610
        %vm618 = vcmask 392192
        %v620 = vsel %vm618, %v536, 0
        %v623 = vsel %vm618, %v537, 0
        %v626 = vsel %vm618, %v538, 0
        %v629 = vsel %vm618, %v539, 0
        %v632 = vsel %vm618, %v540, 0
        %v635 = vsel %vm618, %v541, 0
        %v638 = vsel %vm618, %v542, 0
        %v641 = vsel %vm618, %v543, 0
        %v644 = vsel %vm618, %v544, 0
        %v647 = vsel %vm618, %v545, 0
        %v650 = vsel %vm618, %v546, 0
        %v653 = vsel %vm618, %v547, 0
        %v656 = vsel %vm618, %v548, 0
        %v659 = vsel %vm618, %v549, 0
        %v662 = vsel %vm618, %v550, 0
        %v665 = vsel %vm618, %v551, 0
        %v668 = vsel %vm618, %v552, 0
        %v671 = vsel %vm618, %v553, 0
        %v674 = vsel %vm618, %v554, 0
        %v677 = vsel %vm618, %v555, 0
        %v680 = vsel %vm618, %v556, 0
        %v683 = vsel %vm618, %v557, 0
        %v686 = vsel %vm618, %v558, 0
        %v689 = vsel %vm618, %v559, 0
        %v692 = vsel %vm618, %v560, 0
        %v695 = vsel %vm618, %v561, 0
        %v698 = vsel %vm618, %v562, 0
        %v701 = vsel %vm618, %v563, 0
        %v704 = vsel %vm618, %v564, 0
        %v707 = vsel %vm618, %v565, 0
        %v710 = vsel %vm618, %v566, 0
        %v713 = vsel %vm618, %v567, 0
        %v716 = vsel %vm618, %v568, 0
        %v719 = vsel %vm618, %v569, 0
        %v722 = vsel %vm618, %v570, 0
        %v725 = vsel %vm618, %v571, 0
        %v728 = vsel %vm618, %v572, 0
        %v731 = vsel %vm618, %v573, 0
        %v734 = vsel %vm618, %v574, 0
        %v737 = vsel %vm618, %v575, 0
        %v740 = vsel %vm618, %v576, 0
        %v743 = vsel %vm618, %v577, 0
        %v746 = vsel %vm618, %v578, 0
        %v749 = vsel %vm618, %v579, 0
        %v752 = vsel %vm618, %v580, 0
        %v755 = vsel %vm618, %v581, 0
        %v758 = vsel %vm618, %v582, 0
        %v761 = vsel %vm618, %v583, 0
        %v764 = vsel %vm618, %v584, 0
        %v767 = vsel %vm618, %v585, 0
        %v770 = vsel %vm618, %v586, 0
        %v773 = vsel %vm618, %v587, 0
        %v776 = vsel %vm618, %v588, 0
        %v779 = vsel %vm618, %v589, 0
        %v782 = vsel %vm618, %v590, 0
        %v785 = vsel %vm618, %v591, 0
        %v788 = vsel %vm618, %v592, 0
        %v791 = vsel %vm618, %v593, 0
        %v794 = vsel %vm618, %v594, 0
        %v797 = vsel %vm618, %v595, 0
        %v800 = vsel %vm618, %v596, 0
        %v803 = vsel %vm618, %v597, 0
        %v806 = vsel %vm618, %v598, 0
        %v809 = vsel %vm618, %v599, 0
        %811 = vmatpush.bf16.msra.mxu0 0
        %812 = vmatpush.bf16.msra.mxu0 0
        %813 = vmatpush.bf16.msra.mxu0 0
        %814 = vmatpush.bf16.msra.mxu0 0
        %815 = vmatpush.bf16.msra.mxu0 0
        %816 = vmatpush.bf16.msra.mxu0 %v614
        %817 = vmatpush.bf16.msra.mxu0 %v613
        %818 = vmatpush.bf16.msra.mxu0 %v612
        %819 = vmatmul.bf16.gmra.mxu0 %v620
        %v820 = vpop.f32.mrf.mxu0
        %v821 = vadd.f32 0.0, %v820
        %v822 = vpop.f32.mrf.mxu0
        %v823 = vadd.f32 0.0, %v822
        %824 = vmatmul.bf16.gmra.mxu0 %v623
        %v825 = vpop.f32.mrf.mxu0
        %v826 = vadd.f32 0.0, %v825
        %v827 = vpop.f32.mrf.mxu0
        %v828 = vadd.f32 0.0, %v827
        %829 = vmatmul.bf16.gmra.mxu0 %v626
        %v830 = vpop.f32.mrf.mxu0
        %v831 = vadd.f32 0.0, %v830
        %v832 = vpop.f32.mrf.mxu0
        %v833 = vadd.f32 0.0, %v832
        %834 = vmatmul.bf16.gmra.mxu0 %v629
        %v835 = vpop.f32.mrf.mxu0
        %v836 = vadd.f32 0.0, %v835
        %v837 = vpop.f32.mrf.mxu0
        %v838 = vadd.f32 0.0, %v837
        %839 = vmatmul.bf16.gmra.mxu0 %v632
        %v840 = vpop.f32.mrf.mxu0
        %v841 = vadd.f32 0.0, %v840
        %v842 = vpop.f32.mrf.mxu0
        %v843 = vadd.f32 0.0, %v842
        %844 = vmatmul.bf16.gmra.mxu0 %v635
        %v845 = vpop.f32.mrf.mxu0
        %v846 = vadd.f32 0.0, %v845
        %v847 = vpop.f32.mrf.mxu0
        %v848 = vadd.f32 0.0, %v847
        %849 = vmatmul.bf16.gmra.mxu0 %v638
        %v850 = vpop.f32.mrf.mxu0
        %v851 = vadd.f32 0.0, %v850
        %v852 = vpop.f32.mrf.mxu0
        %v853 = vadd.f32 0.0, %v852
        %854 = vmatmul.bf16.gmra.mxu0 %v641
        %v855 = vpop.f32.mrf.mxu0
        %v856 = vadd.f32 0.0, %v855
        %v857 = vpop.f32.mrf.mxu0
        %v858 = vadd.f32 0.0, %v857
        %859 = vmatmul.bf16.gmra.mxu0 %v644
        %v860 = vpop.f32.mrf.mxu0
        %v861 = vadd.f32 0.0, %v860
        %v862 = vpop.f32.mrf.mxu0
        %v863 = vadd.f32 0.0, %v862
        %864 = vmatmul.bf16.gmra.mxu0 %v647
        %v865 = vpop.f32.mrf.mxu0
        %v866 = vadd.f32 0.0, %v865
        %v867 = vpop.f32.mrf.mxu0
        %v868 = vadd.f32 0.0, %v867
        %869 = vmatmul.bf16.gmra.mxu0 %v650
        %v870 = vpop.f32.mrf.mxu0
        %v871 = vadd.f32 0.0, %v870
        %v872 = vpop.f32.mrf.mxu0
        %v873 = vadd.f32 0.0, %v872
        %874 = vmatmul.bf16.gmra.mxu0 %v653
        %v875 = vpop.f32.mrf.mxu0
        %v876 = vadd.f32 0.0, %v875
        %v877 = vpop.f32.mrf.mxu0
        %v878 = vadd.f32 0.0, %v877
        %879 = vmatmul.bf16.gmra.mxu0 %v656
        %v880 = vpop.f32.mrf.mxu0
        %v881 = vadd.f32 0.0, %v880
        %v882 = vpop.f32.mrf.mxu0
        %v883 = vadd.f32 0.0, %v882
        %884 = vmatmul.bf16.gmra.mxu0 %v659
        %v885 = vpop.f32.mrf.mxu0
        %v886 = vadd.f32 0.0, %v885
        %v887 = vpop.f32.mrf.mxu0
        %v888 = vadd.f32 0.0, %v887
        %889 = vmatmul.bf16.gmra.mxu0 %v662
        %v890 = vpop.f32.mrf.mxu0
        %v891 = vadd.f32 0.0, %v890
        %v892 = vpop.f32.mrf.mxu0
        %v893 = vadd.f32 0.0, %v892
        %894 = vmatmul.bf16.gmra.mxu0 %v665
        %v895 = vpop.f32.mrf.mxu0
        %v896 = vadd.f32 0.0, %v895
        %v897 = vpop.f32.mrf.mxu0
        %v898 = vadd.f32 0.0, %v897
        %899 = vmatmul.bf16.gmra.mxu0 %v668
        %v900 = vpop.f32.mrf.mxu0
        %v901 = vadd.f32 0.0, %v900
        %v902 = vpop.f32.mrf.mxu0
        %v903 = vadd.f32 0.0, %v902
        %904 = vmatmul.bf16.gmra.mxu0 %v671
        %v905 = vpop.f32.mrf.mxu0
        %v906 = vadd.f32 0.0, %v905
        %v907 = vpop.f32.mrf.mxu0
        %v908 = vadd.f32 0.0, %v907
        %909 = vmatmul.bf16.gmra.mxu0 %v674
        %v910 = vpop.f32.mrf.mxu0
        %v911 = vadd.f32 0.0, %v910
        %v912 = vpop.f32.mrf.mxu0
        %v913 = vadd.f32 0.0, %v912
        %914 = vmatmul.bf16.gmra.mxu0 %v677
        %v915 = vpop.f32.mrf.mxu0
        %v916 = vadd.f32 0.0, %v915
        %v917 = vpop.f32.mrf.mxu0
        %v918 = vadd.f32 0.0, %v917
        %919 = vmatmul.bf16.gmra.mxu0 %v680
        %v920 = vpop.f32.mrf.mxu0
        %v921 = vadd.f32 0.0, %v920
        %v922 = vpop.f32.mrf.mxu0
        %v923 = vadd.f32 0.0, %v922
        %924 = vmatmul.bf16.gmra.mxu0 %v683
        %v925 = vpop.f32.mrf.mxu0
        %v926 = vadd.f32 0.0, %v925
        %v927 = vpop.f32.mrf.mxu0
        %v928 = vadd.f32 0.0, %v927
        %929 = vmatmul.bf16.gmra.mxu0 %v686
        %v930 = vpop.f32.mrf.mxu0
        %v931 = vadd.f32 0.0, %v930
        %v932 = vpop.f32.mrf.mxu0
        %v933 = vadd.f32 0.0, %v932
        %934 = vmatmul.bf16.gmra.mxu0 %v689
        %v935 = vpop.f32.mrf.mxu0
        %v936 = vadd.f32 0.0, %v935
        %v937 = vpop.f32.mrf.mxu0
        %v938 = vadd.f32 0.0, %v937
        %939 = vmatmul.bf16.gmra.mxu0 %v692
        %v940 = vpop.f32.mrf.mxu0
        %v941 = vadd.f32 0.0, %v940
        %v942 = vpop.f32.mrf.mxu0
        %v943 = vadd.f32 0.0, %v942
        %944 = vmatmul.bf16.gmra.mxu0 %v695
        %v945 = vpop.f32.mrf.mxu0
        %v946 = vadd.f32 0.0, %v945
        %v947 = vpop.f32.mrf.mxu0
        %v948 = vadd.f32 0.0, %v947
        %949 = vmatmul.bf16.gmra.mxu0 %v698
        %v950 = vpop.f32.mrf.mxu0
        %v951 = vadd.f32 0.0, %v950
        %v952 = vpop.f32.mrf.mxu0
        %v953 = vadd.f32 0.0, %v952
        %954 = vmatmul.bf16.gmra.mxu0 %v701
        %v955 = vpop.f32.mrf.mxu0
        %v956 = vadd.f32 0.0, %v955
        %v957 = vpop.f32.mrf.mxu0
        %v958 = vadd.f32 0.0, %v957
        %959 = vmatmul.bf16.gmra.mxu0 %v704
        %v960 = vpop.f32.mrf.mxu0
        %v961 = vadd.f32 0.0, %v960
        %v962 = vpop.f32.mrf.mxu0
        %v963 = vadd.f32 0.0, %v962
        %964 = vmatmul.bf16.gmra.mxu0 %v707
        %v965 = vpop.f32.mrf.mxu0
        %v966 = vadd.f32 0.0, %v965
        %v967 = vpop.f32.mrf.mxu0
        %v968 = vadd.f32 0.0, %v967
        %969 = vmatmul.bf16.gmra.mxu0 %v710
        %v970 = vpop.f32.mrf.mxu0
        %v971 = vadd.f32 0.0, %v970
        %v972 = vpop.f32.mrf.mxu0
        %v973 = vadd.f32 0.0, %v972
        %974 = vmatmul.bf16.gmra.mxu0 %v713
        %v975 = vpop.f32.mrf.mxu0
        %v976 = vadd.f32 0.0, %v975
        %v977 = vpop.f32.mrf.mxu0
        %v978 = vadd.f32 0.0, %v977
        %979 = vmatmul.bf16.gmra.mxu0 %v716
        %v980 = vpop.f32.mrf.mxu0
        %v981 = vadd.f32 0.0, %v980
        %v982 = vpop.f32.mrf.mxu0
        %v983 = vadd.f32 0.0, %v982
        %984 = vmatmul.bf16.gmra.mxu0 %v719
        %v985 = vpop.f32.mrf.mxu0
        %v986 = vadd.f32 0.0, %v985
        %v987 = vpop.f32.mrf.mxu0
        %v988 = vadd.f32 0.0, %v987
        %989 = vmatmul.bf16.gmra.mxu0 %v722
        %v990 = vpop.f32.mrf.mxu0
        %v991 = vadd.f32 0.0, %v990
        %v992 = vpop.f32.mrf.mxu0
        %v993 = vadd.f32 0.0, %v992
        %994 = vmatmul.bf16.gmra.mxu0 %v725
        %v995 = vpop.f32.mrf.mxu0
        %v996 = vadd.f32 0.0, %v995
        %v997 = vpop.f32.mrf.mxu0
        %v998 = vadd.f32 0.0, %v997
        %999 = vmatmul.bf16.gmra.mxu0 %v728
        %v1000 = vpop.f32.mrf.mxu0
        %v1001 = vadd.f32 0.0, %v1000
        %v1002 = vpop.f32.mrf.mxu0
        %v1003 = vadd.f32 0.0, %v1002
        %1004 = vmatmul.bf16.gmra.mxu0 %v731
        %v1005 = vpop.f32.mrf.mxu0
        %v1006 = vadd.f32 0.0, %v1005
        %v1007 = vpop.f32.mrf.mxu0
        %v1008 = vadd.f32 0.0, %v1007
        %1009 = vmatmul.bf16.gmra.mxu0 %v734
        %v1010 = vpop.f32.mrf.mxu0
        %v1011 = vadd.f32 0.0, %v1010
        %v1012 = vpop.f32.mrf.mxu0
        %v1013 = vadd.f32 0.0, %v1012
        %1014 = vmatmul.bf16.gmra.mxu0 %v737
        %v1015 = vpop.f32.mrf.mxu0
        %v1016 = vadd.f32 0.0, %v1015
        %v1017 = vpop.f32.mrf.mxu0
        %v1018 = vadd.f32 0.0, %v1017
        %1019 = vmatmul.bf16.gmra.mxu0 %v740
        %v1020 = vpop.f32.mrf.mxu0
        %v1021 = vadd.f32 0.0, %v1020
        %v1022 = vpop.f32.mrf.mxu0
        %v1023 = vadd.f32 0.0, %v1022
        %1024 = vmatmul.bf16.gmra.mxu0 %v743
        %v1025 = vpop.f32.mrf.mxu0
        %v1026 = vadd.f32 0.0, %v1025
        %v1027 = vpop.f32.mrf.mxu0
        %v1028 = vadd.f32 0.0, %v1027
        %1029 = vmatmul.bf16.gmra.mxu0 %v746
        %v1030 = vpop.f32.mrf.mxu0
        %v1031 = vadd.f32 0.0, %v1030
        %v1032 = vpop.f32.mrf.mxu0
        %v1033 = vadd.f32 0.0, %v1032
        %1034 = vmatmul.bf16.gmra.mxu0 %v749
        %v1035 = vpop.f32.mrf.mxu0
        %v1036 = vadd.f32 0.0, %v1035
        %v1037 = vpop.f32.mrf.mxu0
        %v1038 = vadd.f32 0.0, %v1037
        %1039 = vmatmul.bf16.gmra.mxu0 %v752
        %v1040 = vpop.f32.mrf.mxu0
        %v1041 = vadd.f32 0.0, %v1040
        %v1042 = vpop.f32.mrf.mxu0
        %v1043 = vadd.f32 0.0, %v1042
        %1044 = vmatmul.bf16.gmra.mxu0 %v755
        %v1045 = vpop.f32.mrf.mxu0
        %v1046 = vadd.f32 0.0, %v1045
        %v1047 = vpop.f32.mrf.mxu0
        %v1048 = vadd.f32 0.0, %v1047
        %1049 = vmatmul.bf16.gmra.mxu0 %v758
        %v1050 = vpop.f32.mrf.mxu0
        %v1051 = vadd.f32 0.0, %v1050
        %v1052 = vpop.f32.mrf.mxu0
        %v1053 = vadd.f32 0.0, %v1052
        %1054 = vmatmul.bf16.gmra.mxu0 %v761
        %v1055 = vpop.f32.mrf.mxu0
        %v1056 = vadd.f32 0.0, %v1055
        %v1057 = vpop.f32.mrf.mxu0
        %v1058 = vadd.f32 0.0, %v1057
        %1059 = vmatmul.bf16.gmra.mxu0 %v764
        %v1060 = vpop.f32.mrf.mxu0
        %v1061 = vadd.f32 0.0, %v1060
        %v1062 = vpop.f32.mrf.mxu0
        %v1063 = vadd.f32 0.0, %v1062
        %1064 = vmatmul.bf16.gmra.mxu0 %v767
        %v1065 = vpop.f32.mrf.mxu0
        %v1066 = vadd.f32 0.0, %v1065
        %v1067 = vpop.f32.mrf.mxu0
        %v1068 = vadd.f32 0.0, %v1067
        %1069 = vmatmul.bf16.gmra.mxu0 %v770
        %v1070 = vpop.f32.mrf.mxu0
        %v1071 = vadd.f32 0.0, %v1070
        %v1072 = vpop.f32.mrf.mxu0
        %v1073 = vadd.f32 0.0, %v1072
        %1074 = vmatmul.bf16.gmra.mxu0 %v773
        %v1075 = vpop.f32.mrf.mxu0
        %v1076 = vadd.f32 0.0, %v1075
        %v1077 = vpop.f32.mrf.mxu0
        %v1078 = vadd.f32 0.0, %v1077
        %1079 = vmatmul.bf16.gmra.mxu0 %v776
        %v1080 = vpop.f32.mrf.mxu0
        %v1081 = vadd.f32 0.0, %v1080
        %v1082 = vpop.f32.mrf.mxu0
        %v1083 = vadd.f32 0.0, %v1082
        %1084 = vmatmul.bf16.gmra.mxu0 %v779
        %v1085 = vpop.f32.mrf.mxu0
        %v1086 = vadd.f32 0.0, %v1085
        %v1087 = vpop.f32.mrf.mxu0
        %v1088 = vadd.f32 0.0, %v1087
        %1089 = vmatmul.bf16.gmra.mxu0 %v782
        %v1090 = vpop.f32.mrf.mxu0
        %v1091 = vadd.f32 0.0, %v1090
        %v1092 = vpop.f32.mrf.mxu0
        %v1093 = vadd.f32 0.0, %v1092
        %1094 = vmatmul.bf16.gmra.mxu0 %v785
        %v1095 = vpop.f32.mrf.mxu0
        %v1096 = vadd.f32 0.0, %v1095
        %v1097 = vpop.f32.mrf.mxu0
        %v1098 = vadd.f32 0.0, %v1097
        %1099 = vmatmul.bf16.gmra.mxu0 %v788
        %v1100 = vpop.f32.mrf.mxu0
        %v1101 = vadd.f32 0.0, %v1100
        %v1102 = vpop.f32.mrf.mxu0
        %v1103 = vadd.f32 0.0, %v1102
        %1104 = vmatmul.bf16.gmra.mxu0 %v791
        %v1105 = vpop.f32.mrf.mxu0
        %v1106 = vadd.f32 0.0, %v1105
        %v1107 = vpop.f32.mrf.mxu0
        %v1108 = vadd.f32 0.0, %v1107
        %1109 = vmatmul.bf16.gmra.mxu0 %v794
        %v1110 = vpop.f32.mrf.mxu0
        %v1111 = vadd.f32 0.0, %v1110
        %v1112 = vpop.f32.mrf.mxu0
        %v1113 = vadd.f32 0.0, %v1112
        %1114 = vmatmul.bf16.gmra.mxu0 %v797
        %v1115 = vpop.f32.mrf.mxu0
        %v1116 = vadd.f32 0.0, %v1115
        %v1117 = vpop.f32.mrf.mxu0
        %v1118 = vadd.f32 0.0, %v1117
        %1119 = vmatmul.bf16.gmra.mxu0 %v800
        %v1120 = vpop.f32.mrf.mxu0
        %v1121 = vadd.f32 0.0, %v1120
        %v1122 = vpop.f32.mrf.mxu0
        %v1123 = vadd.f32 0.0, %v1122
        %1124 = vmatmul.bf16.gmra.mxu0 %v803
        %v1125 = vpop.f32.mrf.mxu0
        %v1126 = vadd.f32 0.0, %v1125
        %v1127 = vpop.f32.mrf.mxu0
        %v1128 = vadd.f32 0.0, %v1127
        %1129 = vmatmul.bf16.gmra.mxu0 %v806
        %v1130 = vpop.f32.mrf.mxu0
        %v1131 = vadd.f32 0.0, %v1130
        %v1132 = vpop.f32.mrf.mxu0
        %v1133 = vadd.f32 0.0, %v1132
        %1134 = vmatmul.bf16.gmra.mxu0 %v809
        %v1135 = vpop.f32.mrf.mxu0
        %v1136 = vadd.f32 0.0, %v1135
        %v1137 = vpop.f32.mrf.mxu0
        %v1138 = vadd.f32 0.0, %v1137
        %1139 = vdwg.mxu0
        %vm1140 = vcmp.gt.f32.partialorder %v821, 0.0
        %vm1141 = vcmp.gt.f32.partialorder %v823, 0.0
        %vm1142 = vcmp.gt.f32.partialorder %v826, 0.0
        %vm1143 = vcmp.gt.f32.partialorder %v828, 0.0
        %vm1144 = vcmp.gt.f32.partialorder %v831, 0.0
        %vm1145 = vcmp.gt.f32.partialorder %v833, 0.0
        %vm1146 = vcmp.gt.f32.partialorder %v836, 0.0
        %vm1147 = vcmp.gt.f32.partialorder %v838, 0.0
        %vm1148 = vcmp.gt.f32.partialorder %v841, 0.0
        %vm1149 = vcmp.gt.f32.partialorder %v843, 0.0
        %vm1150 = vcmp.gt.f32.partialorder %v846, 0.0
        %vm1151 = vcmp.gt.f32.partialorder %v848, 0.0
        %vm1152 = vcmp.gt.f32.partialorder %v851, 0.0
        %vm1153 = vcmp.gt.f32.partialorder %v853, 0.0
        %vm1154 = vcmp.gt.f32.partialorder %v856, 0.0
        %vm1155 = vcmp.gt.f32.partialorder %v858, 0.0
        %vm1156 = vcmp.gt.f32.partialorder %v861, 0.0
        %vm1157 = vcmp.gt.f32.partialorder %v863, 0.0
        %vm1158 = vcmp.gt.f32.partialorder %v866, 0.0
        %vm1159 = vcmp.gt.f32.partialorder %v868, 0.0
        %vm1160 = vcmp.gt.f32.partialorder %v871, 0.0
        %vm1161 = vcmp.gt.f32.partialorder %v873, 0.0
        %vm1162 = vcmp.gt.f32.partialorder %v876, 0.0
        %vm1163 = vcmp.gt.f32.partialorder %v878, 0.0
        %vm1164 = vcmp.gt.f32.partialorder %v881, 0.0
        %vm1165 = vcmp.gt.f32.partialorder %v883, 0.0
        %vm1166 = vcmp.gt.f32.partialorder %v886, 0.0
        %vm1167 = vcmp.gt.f32.partialorder %v888, 0.0
        %vm1168 = vcmp.gt.f32.partialorder %v891, 0.0
        %vm1169 = vcmp.gt.f32.partialorder %v893, 0.0
        %vm1170 = vcmp.gt.f32.partialorder %v896, 0.0
        %vm1171 = vcmp.gt.f32.partialorder %v898, 0.0
        %vm1172 = vcmp.gt.f32.partialorder %v901, 0.0
        %vm1173 = vcmp.gt.f32.partialorder %v903, 0.0
        %vm1174 = vcmp.gt.f32.partialorder %v906, 0.0
        %vm1175 = vcmp.gt.f32.partialorder %v908, 0.0
        %vm1176 = vcmp.gt.f32.partialorder %v911, 0.0
        %vm1177 = vcmp.gt.f32.partialorder %v913, 0.0
        %vm1178 = vcmp.gt.f32.partialorder %v916, 0.0
        %vm1179 = vcmp.gt.f32.partialorder %v918, 0.0
        %vm1180 = vcmp.gt.f32.partialorder %v921, 0.0
        %vm1181 = vcmp.gt.f32.partialorder %v923, 0.0
        %vm1182 = vcmp.gt.f32.partialorder %v926, 0.0
        %vm1183 = vcmp.gt.f32.partialorder %v928, 0.0
        %vm1184 = vcmp.gt.f32.partialorder %v931, 0.0
        %vm1185 = vcmp.gt.f32.partialorder %v933, 0.0
        %vm1186 = vcmp.gt.f32.partialorder %v936, 0.0
        %vm1187 = vcmp.gt.f32.partialorder %v938, 0.0
        %vm1188 = vcmp.gt.f32.partialorder %v941, 0.0
        %vm1189 = vcmp.gt.f32.partialorder %v943, 0.0
        %vm1190 = vcmp.gt.f32.partialorder %v946, 0.0
        %vm1191 = vcmp.gt.f32.partialorder %v948, 0.0
        %vm1192 = vcmp.gt.f32.partialorder %v951, 0.0
        %vm1193 = vcmp.gt.f32.partialorder %v953, 0.0
        %vm1194 = vcmp.gt.f32.partialorder %v956, 0.0
        %vm1195 = vcmp.gt.f32.partialorder %v958, 0.0
        %vm1196 = vcmp.gt.f32.partialorder %v961, 0.0
        %vm1197 = vcmp.gt.f32.partialorder %v963, 0.0
        %vm1198 = vcmp.gt.f32.partialorder %v966, 0.0
        %vm1199 = vcmp.gt.f32.partialorder %v968, 0.0
        %vm1200 = vcmp.gt.f32.partialorder %v971, 0.0
        %vm1201 = vcmp.gt.f32.partialorder %v973, 0.0
        %vm1202 = vcmp.gt.f32.partialorder %v976, 0.0
        %vm1203 = vcmp.gt.f32.partialorder %v978, 0.0
        %vm1204 = vcmp.gt.f32.partialorder %v981, 0.0
        %vm1205 = vcmp.gt.f32.partialorder %v983, 0.0
        %vm1206 = vcmp.gt.f32.partialorder %v986, 0.0
        %vm1207 = vcmp.gt.f32.partialorder %v988, 0.0
        %vm1208 = vcmp.gt.f32.partialorder %v991, 0.0
        %vm1209 = vcmp.gt.f32.partialorder %v993, 0.0
        %vm1210 = vcmp.gt.f32.partialorder %v996, 0.0
        %vm1211 = vcmp.gt.f32.partialorder %v998, 0.0
        %vm1212 = vcmp.gt.f32.partialorder %v1001, 0.0
        %vm1213 = vcmp.gt.f32.partialorder %v1003, 0.0
        %vm1214 = vcmp.gt.f32.partialorder %v1006, 0.0
        %vm1215 = vcmp.gt.f32.partialorder %v1008, 0.0
        %vm1216 = vcmp.gt.f32.partialorder %v1011, 0.0
        %vm1217 = vcmp.gt.f32.partialorder %v1013, 0.0
        %vm1218 = vcmp.gt.f32.partialorder %v1016, 0.0
        %vm1219 = vcmp.gt.f32.partialorder %v1018, 0.0
        %vm1220 = vcmp.gt.f32.partialorder %v1021, 0.0
        %vm1221 = vcmp.gt.f32.partialorder %v1023, 0.0
        %vm1222 = vcmp.gt.f32.partialorder %v1026, 0.0
        %vm1223 = vcmp.gt.f32.partialorder %v1028, 0.0
        %vm1224 = vcmp.gt.f32.partialorder %v1031, 0.0
        %vm1225 = vcmp.gt.f32.partialorder %v1033, 0.0
        %vm1226 = vcmp.gt.f32.partialorder %v1036, 0.0
        %vm1227 = vcmp.gt.f32.partialorder %v1038, 0.0
        %vm1228 = vcmp.gt.f32.partialorder %v1041, 0.0
        %vm1229 = vcmp.gt.f32.partialorder %v1043, 0.0
        %vm1230 = vcmp.gt.f32.partialorder %v1046, 0.0
        %vm1231 = vcmp.gt.f32.partialorder %v1048, 0.0
        %vm1232 = vcmp.gt.f32.partialorder %v1051, 0.0
        %vm1233 = vcmp.gt.f32.partialorder %v1053, 0.0
        %vm1234 = vcmp.gt.f32.partialorder %v1056, 0.0
        %vm1235 = vcmp.gt.f32.partialorder %v1058, 0.0
        %vm1236 = vcmp.gt.f32.partialorder %v1061, 0.0
        %vm1237 = vcmp.gt.f32.partialorder %v1063, 0.0
        %vm1238 = vcmp.gt.f32.partialorder %v1066, 0.0
        %vm1239 = vcmp.gt.f32.partialorder %v1068, 0.0
        %vm1240 = vcmp.gt.f32.partialorder %v1071, 0.0
        %vm1241 = vcmp.gt.f32.partialorder %v1073, 0.0
        %vm1242 = vcmp.gt.f32.partialorder %v1076, 0.0
        %vm1243 = vcmp.gt.f32.partialorder %v1078, 0.0
        %vm1244 = vcmp.gt.f32.partialorder %v1081, 0.0
        %vm1245 = vcmp.gt.f32.partialorder %v1083, 0.0
        %vm1246 = vcmp.gt.f32.partialorder %v1086, 0.0
        %vm1247 = vcmp.gt.f32.partialorder %v1088, 0.0
        %vm1248 = vcmp.gt.f32.partialorder %v1091, 0.0
        %vm1249 = vcmp.gt.f32.partialorder %v1093, 0.0
        %vm1250 = vcmp.gt.f32.partialorder %v1096, 0.0
        %vm1251 = vcmp.gt.f32.partialorder %v1098, 0.0
        %vm1252 = vcmp.gt.f32.partialorder %v1101, 0.0
        %vm1253 = vcmp.gt.f32.partialorder %v1103, 0.0
        %vm1254 = vcmp.gt.f32.partialorder %v1106, 0.0
        %vm1255 = vcmp.gt.f32.partialorder %v1108, 0.0
        %vm1256 = vcmp.gt.f32.partialorder %v1111, 0.0
        %vm1257 = vcmp.gt.f32.partialorder %v1113, 0.0
        %vm1258 = vcmp.gt.f32.partialorder %v1116, 0.0
        %vm1259 = vcmp.gt.f32.partialorder %v1118, 0.0
        %vm1260 = vcmp.gt.f32.partialorder %v1121, 0.0
        %vm1261 = vcmp.gt.f32.partialorder %v1123, 0.0
        %vm1262 = vcmp.gt.f32.partialorder %v1126, 0.0
        %vm1263 = vcmp.gt.f32.partialorder %v1128, 0.0
        %vm1264 = vcmp.gt.f32.partialorder %v1131, 0.0
        %vm1265 = vcmp.gt.f32.partialorder %v1133, 0.0
        %vm1266 = vcmp.gt.f32.partialorder %v1136, 0.0
        %vm1267 = vcmp.gt.f32.partialorder %v1138, 0.0
        %v1268 = vmul.f32 %v821, 0.2
        %v1269 = vmul.f32 %v823, 0.2
        %v1270 = vmul.f32 %v826, 0.2
        %v1271 = vmul.f32 %v828, 0.2
        %v1272 = vmul.f32 %v831, 0.2
        %v1273 = vmul.f32 %v833, 0.2
        %v1274 = vmul.f32 %v836, 0.2
        %v1275 = vmul.f32 %v838, 0.2
        %v1276 = vmul.f32 %v841, 0.2
        %v1277 = vmul.f32 %v843, 0.2
        %v1278 = vmul.f32 %v846, 0.2
        %v1279 = vmul.f32 %v848, 0.2
        %v1280 = vmul.f32 %v851, 0.2
        %v1281 = vmul.f32 %v853, 0.2
        %v1282 = vmul.f32 %v856, 0.2
        %v1283 = vmul.f32 %v858, 0.2
        %v1284 = vmul.f32 %v861, 0.2
        %v1285 = vmul.f32 %v863, 0.2
        %v1286 = vmul.f32 %v866, 0.2
        %v1287 = vmul.f32 %v868, 0.2
        %v1288 = vmul.f32 %v871, 0.2
        %v1289 = vmul.f32 %v873, 0.2
        %v1290 = vmul.f32 %v876, 0.2
        %v1291 = vmul.f32 %v878, 0.2
        %v1292 = vmul.f32 %v881, 0.2
        %v1293 = vmul.f32 %v883, 0.2
        %v1294 = vmul.f32 %v886, 0.2
        %v1295 = vmul.f32 %v888, 0.2
        %v1296 = vmul.f32 %v891, 0.2
        %v1297 = vmul.f32 %v893, 0.2
        %v1298 = vmul.f32 %v896, 0.2
        %v1299 = vmul.f32 %v898, 0.2
        %v1300 = vmul.f32 %v901, 0.2
        %v1301 = vmul.f32 %v903, 0.2
        %v1302 = vmul.f32 %v906, 0.2
        %v1303 = vmul.f32 %v908, 0.2
        %v1304 = vmul.f32 %v911, 0.2
        %v1305 = vmul.f32 %v913, 0.2
        %v1306 = vmul.f32 %v916, 0.2
        %v1307 = vmul.f32 %v918, 0.2
        %v1308 = vmul.f32 %v921, 0.2
        %v1309 = vmul.f32 %v923, 0.2
        %v1310 = vmul.f32 %v926, 0.2
        %v1311 = vmul.f32 %v928, 0.2
        %v1312 = vmul.f32 %v931, 0.2
        %v1313 = vmul.f32 %v933, 0.2
        %v1314 = vmul.f32 %v936, 0.2
        %v1315 = vmul.f32 %v938, 0.2
        %v1316 = vmul.f32 %v941, 0.2
        %v1317 = vmul.f32 %v943, 0.2
        %v1318 = vmul.f32 %v946, 0.2
        %v1319 = vmul.f32 %v948, 0.2
        %v1320 = vmul.f32 %v951, 0.2
        %v1321 = vmul.f32 %v953, 0.2
        %v1322 = vmul.f32 %v956, 0.2
        %v1323 = vmul.f32 %v958, 0.2
        %v1324 = vmul.f32 %v961, 0.2
        %v1325 = vmul.f32 %v963, 0.2
        %v1326 = vmul.f32 %v966, 0.2
        %v1327 = vmul.f32 %v968, 0.2
        %v1328 = vmul.f32 %v971, 0.2
        %v1329 = vmul.f32 %v973, 0.2
        %v1330 = vmul.f32 %v976, 0.2
        %v1331 = vmul.f32 %v978, 0.2
        %v1332 = vmul.f32 %v981, 0.2
        %v1333 = vmul.f32 %v983, 0.2
        %v1334 = vmul.f32 %v986, 0.2
        %v1335 = vmul.f32 %v988, 0.2
        %v1336 = vmul.f32 %v991, 0.2
        %v1337 = vmul.f32 %v993, 0.2
        %v1338 = vmul.f32 %v996, 0.2
        %v1339 = vmul.f32 %v998, 0.2
        %v1340 = vmul.f32 %v1001, 0.2
        %v1341 = vmul.f32 %v1003, 0.2
        %v1342 = vmul.f32 %v1006, 0.2
        %v1343 = vmul.f32 %v1008, 0.2
        %v1344 = vmul.f32 %v1011, 0.2
        %v1345 = vmul.f32 %v1013, 0.2
        %v1346 = vmul.f32 %v1016, 0.2
        %v1347 = vmul.f32 %v1018, 0.2
        %v1348 = vmul.f32 %v1021, 0.2
        %v1349 = vmul.f32 %v1023, 0.2
        %v1350 = vmul.f32 %v1026, 0.2
        %v1351 = vmul.f32 %v1028, 0.2
        %v1352 = vmul.f32 %v1031, 0.2
        %v1353 = vmul.f32 %v1033, 0.2
        %v1354 = vmul.f32 %v1036, 0.2
        %v1355 = vmul.f32 %v1038, 0.2
        %v1356 = vmul.f32 %v1041, 0.2
        %v1357 = vmul.f32 %v1043, 0.2
        %v1358 = vmul.f32 %v1046, 0.2
        %v1359 = vmul.f32 %v1048, 0.2
        %v1360 = vmul.f32 %v1051, 0.2
        %v1361 = vmul.f32 %v1053, 0.2
        %v1362 = vmul.f32 %v1056, 0.2
        %v1363 = vmul.f32 %v1058, 0.2
        %v1364 = vmul.f32 %v1061, 0.2
        %v1365 = vmul.f32 %v1063, 0.2
        %v1366 = vmul.f32 %v1066, 0.2
        %v1367 = vmul.f32 %v1068, 0.2
        %v1368 = vmul.f32 %v1071, 0.2
        %v1369 = vmul.f32 %v1073, 0.2
        %v1370 = vmul.f32 %v1076, 0.2
        %v1371 = vmul.f32 %v1078, 0.2
        %v1372 = vmul.f32 %v1081, 0.2
        %v1373 = vmul.f32 %v1083, 0.2
        %v1374 = vmul.f32 %v1086, 0.2
        %v1375 = vmul.f32 %v1088, 0.2
        %v1376 = vmul.f32 %v1091, 0.2
        %v1377 = vmul.f32 %v1093, 0.2
        %v1378 = vmul.f32 %v1096, 0.2
        %v1379 = vmul.f32 %v1098, 0.2
        %v1380 = vmul.f32 %v1101, 0.2
        %v1381 = vmul.f32 %v1103, 0.2
        %v1382 = vmul.f32 %v1106, 0.2
        %v1383 = vmul.f32 %v1108, 0.2
        %v1384 = vmul.f32 %v1111, 0.2
        %v1385 = vmul.f32 %v1113, 0.2
        %v1386 = vmul.f32 %v1116, 0.2
        %v1387 = vmul.f32 %v1118, 0.2
        %v1388 = vmul.f32 %v1121, 0.2
        %v1389 = vmul.f32 %v1123, 0.2
        %v1390 = vmul.f32 %v1126, 0.2
        %v1391 = vmul.f32 %v1128, 0.2
        %v1392 = vmul.f32 %v1131, 0.2
        %v1393 = vmul.f32 %v1133, 0.2
        %v1394 = vmul.f32 %v1136, 0.2
        %v1395 = vmul.f32 %v1138, 0.2
        %v1396 = vsel %vm1140, %v821, %v1268
        %v1397 = vsel %vm1141, %v823, %v1269
        %v1398 = vsel %vm1142, %v826, %v1270
        %v1399 = vsel %vm1143, %v828, %v1271
        %v1400 = vsel %vm1144, %v831, %v1272
        %v1401 = vsel %vm1145, %v833, %v1273
        %v1402 = vsel %vm1146, %v836, %v1274
        %v1403 = vsel %vm1147, %v838, %v1275
        %v1404 = vsel %vm1148, %v841, %v1276
        %v1405 = vsel %vm1149, %v843, %v1277
        %v1406 = vsel %vm1150, %v846, %v1278
        %v1407 = vsel %vm1151, %v848, %v1279
        %v1408 = vsel %vm1152, %v851, %v1280
        %v1409 = vsel %vm1153, %v853, %v1281
        %v1410 = vsel %vm1154, %v856, %v1282
        %v1411 = vsel %vm1155, %v858, %v1283
        %v1412 = vsel %vm1156, %v861, %v1284
        %v1413 = vsel %vm1157, %v863, %v1285
        %v1414 = vsel %vm1158, %v866, %v1286
        %v1415 = vsel %vm1159, %v868, %v1287
        %v1416 = vsel %vm1160, %v871, %v1288
        %v1417 = vsel %vm1161, %v873, %v1289
        %v1418 = vsel %vm1162, %v876, %v1290
        %v1419 = vsel %vm1163, %v878, %v1291
        %v1420 = vsel %vm1164, %v881, %v1292
        %v1421 = vsel %vm1165, %v883, %v1293
        %v1422 = vsel %vm1166, %v886, %v1294
        %v1423 = vsel %vm1167, %v888, %v1295
        %v1424 = vsel %vm1168, %v891, %v1296
        %v1425 = vsel %vm1169, %v893, %v1297
        %v1426 = vsel %vm1170, %v896, %v1298
        %v1427 = vsel %vm1171, %v898, %v1299
        %v1428 = vsel %vm1172, %v901, %v1300
        %v1429 = vsel %vm1173, %v903, %v1301
        %v1430 = vsel %vm1174, %v906, %v1302
        %v1431 = vsel %vm1175, %v908, %v1303
        %v1432 = vsel %vm1176, %v911, %v1304
        %v1433 = vsel %vm1177, %v913, %v1305
        %v1434 = vsel %vm1178, %v916, %v1306
        %v1435 = vsel %vm1179, %v918, %v1307
        %v1436 = vsel %vm1180, %v921, %v1308
        %v1437 = vsel %vm1181, %v923, %v1309
        %v1438 = vsel %vm1182, %v926, %v1310
        %v1439 = vsel %vm1183, %v928, %v1311
        %v1440 = vsel %vm1184, %v931, %v1312
        %v1441 = vsel %vm1185, %v933, %v1313
        %v1442 = vsel %vm1186, %v936, %v1314
        %v1443 = vsel %vm1187, %v938, %v1315
        %v1444 = vsel %vm1188, %v941, %v1316
        %v1445 = vsel %vm1189, %v943, %v1317
        %v1446 = vsel %vm1190, %v946, %v1318
        %v1447 = vsel %vm1191, %v948, %v1319
        %v1448 = vsel %vm1192, %v951, %v1320
        %v1449 = vsel %vm1193, %v953, %v1321
        %v1450 = vsel %vm1194, %v956, %v1322
        %v1451 = vsel %vm1195, %v958, %v1323
        %v1452 = vsel %vm1196, %v961, %v1324
        %v1453 = vsel %vm1197, %v963, %v1325
        %v1454 = vsel %vm1198, %v966, %v1326
        %v1455 = vsel %vm1199, %v968, %v1327
        %v1456 = vsel %vm1200, %v971, %v1328
        %v1457 = vsel %vm1201, %v973, %v1329
        %v1458 = vsel %vm1202, %v976, %v1330
        %v1459 = vsel %vm1203, %v978, %v1331
        %v1460 = vsel %vm1204, %v981, %v1332
        %v1461 = vsel %vm1205, %v983, %v1333
        %v1462 = vsel %vm1206, %v986, %v1334
        %v1463 = vsel %vm1207, %v988, %v1335
        %v1464 = vsel %vm1208, %v991, %v1336
        %v1465 = vsel %vm1209, %v993, %v1337
        %v1466 = vsel %vm1210, %v996, %v1338
        %v1467 = vsel %vm1211, %v998, %v1339
        %v1468 = vsel %vm1212, %v1001, %v1340
        %v1469 = vsel %vm1213, %v1003, %v1341
        %v1470 = vsel %vm1214, %v1006, %v1342
        %v1471 = vsel %vm1215, %v1008, %v1343
        %v1472 = vsel %vm1216, %v1011, %v1344
        %v1473 = vsel %vm1217, %v1013, %v1345
        %v1474 = vsel %vm1218, %v1016, %v1346
        %v1475 = vsel %vm1219, %v1018, %v1347
        %v1476 = vsel %vm1220, %v1021, %v1348
        %v1477 = vsel %vm1221, %v1023, %v1349
        %v1478 = vsel %vm1222, %v1026, %v1350
        %v1479 = vsel %vm1223, %v1028, %v1351
        %v1480 = vsel %vm1224, %v1031, %v1352
        %v1481 = vsel %vm1225, %v1033, %v1353
        %v1482 = vsel %vm1226, %v1036, %v1354
        %v1483 = vsel %vm1227, %v1038, %v1355
        %v1484 = vsel %vm1228, %v1041, %v1356
        %v1485 = vsel %vm1229, %v1043, %v1357
        %v1486 = vsel %vm1230, %v1046, %v1358
        %v1487 = vsel %vm1231, %v1048, %v1359
        %v1488 = vsel %vm1232, %v1051, %v1360
        %v1489 = vsel %vm1233, %v1053, %v1361
        %v1490 = vsel %vm1234, %v1056, %v1362
        %v1491 = vsel %vm1235, %v1058, %v1363
        %v1492 = vsel %vm1236, %v1061, %v1364
        %v1493 = vsel %vm1237, %v1063, %v1365
        %v1494 = vsel %vm1238, %v1066, %v1366
        %v1495 = vsel %vm1239, %v1068, %v1367
        %v1496 = vsel %vm1240, %v1071, %v1368
        %v1497 = vsel %vm1241, %v1073, %v1369
        %v1498 = vsel %vm1242, %v1076, %v1370
        %v1499 = vsel %vm1243, %v1078, %v1371
        %v1500 = vsel %vm1244, %v1081, %v1372
        %v1501 = vsel %vm1245, %v1083, %v1373
        %v1502 = vsel %vm1246, %v1086, %v1374
        %v1503 = vsel %vm1247, %v1088, %v1375
        %v1504 = vsel %vm1248, %v1091, %v1376
        %v1505 = vsel %vm1249, %v1093, %v1377
        %v1506 = vsel %vm1250, %v1096, %v1378
        %v1507 = vsel %vm1251, %v1098, %v1379
        %v1508 = vsel %vm1252, %v1101, %v1380
        %v1509 = vsel %vm1253, %v1103, %v1381
        %v1510 = vsel %vm1254, %v1106, %v1382
        %v1511 = vsel %vm1255, %v1108, %v1383
        %v1512 = vsel %vm1256, %v1111, %v1384
        %v1513 = vsel %vm1257, %v1113, %v1385
        %v1514 = vsel %vm1258, %v1116, %v1386
        %v1515 = vsel %vm1259, %v1118, %v1387
        %v1516 = vsel %vm1260, %v1121, %v1388
        %v1517 = vsel %vm1261, %v1123, %v1389
        %v1518 = vsel %vm1262, %v1126, %v1390
        %v1519 = vsel %vm1263, %v1128, %v1391
        %v1520 = vsel %vm1264, %v1131, %v1392
        %v1521 = vsel %vm1265, %v1133, %v1393
        %v1522 = vsel %vm1266, %v1136, %v1394
        %v1523 = vsel %vm1267, %v1138, %v1395
        %v1524 = vpack.c.bf16 %v1396, %v1396
        %v1525 = vpack.c.bf16 %v1397, %v1397
        %v1526 = vpack.c.bf16 %v1398, %v1398
        %v1527 = vpack.c.bf16 %v1399, %v1399
        %v1528 = vpack.c.bf16 %v1400, %v1400
        %v1529 = vpack.c.bf16 %v1401, %v1401
        %v1530 = vpack.c.bf16 %v1402, %v1402
        %v1531 = vpack.c.bf16 %v1403, %v1403
        %v1532 = vpack.c.bf16 %v1404, %v1404
        %v1533 = vpack.c.bf16 %v1405, %v1405
        %v1534 = vpack.c.bf16 %v1406, %v1406
        %v1535 = vpack.c.bf16 %v1407, %v1407
        %v1536 = vpack.c.bf16 %v1408, %v1408
        %v1537 = vpack.c.bf16 %v1409, %v1409
        %v1538 = vpack.c.bf16 %v1410, %v1410
        %v1539 = vpack.c.bf16 %v1411, %v1411
        %v1540 = vpack.c.bf16 %v1412, %v1412
        %v1541 = vpack.c.bf16 %v1413, %v1413
        %v1542 = vpack.c.bf16 %v1414, %v1414
        %v1543 = vpack.c.bf16 %v1415, %v1415
        %v1544 = vpack.c.bf16 %v1416, %v1416
        %v1545 = vpack.c.bf16 %v1417, %v1417
        %v1546 = vpack.c.bf16 %v1418, %v1418
        %v1547 = vpack.c.bf16 %v1419, %v1419
        %v1548 = vpack.c.bf16 %v1420, %v1420
        %v1549 = vpack.c.bf16 %v1421, %v1421
        %v1550 = vpack.c.bf16 %v1422, %v1422
        %v1551 = vpack.c.bf16 %v1423, %v1423
        %v1552 = vpack.c.bf16 %v1424, %v1424
        %v1553 = vpack.c.bf16 %v1425, %v1425
        %v1554 = vpack.c.bf16 %v1426, %v1426
        %v1555 = vpack.c.bf16 %v1427, %v1427
        %v1556 = vpack.c.bf16 %v1428, %v1428
        %v1557 = vpack.c.bf16 %v1429, %v1429
        %v1558 = vpack.c.bf16 %v1430, %v1430
        %v1559 = vpack.c.bf16 %v1431, %v1431
        %v1560 = vpack.c.bf16 %v1432, %v1432
        %v1561 = vpack.c.bf16 %v1433, %v1433
        %v1562 = vpack.c.bf16 %v1434, %v1434
        %v1563 = vpack.c.bf16 %v1435, %v1435
        %v1564 = vpack.c.bf16 %v1436, %v1436
        %v1565 = vpack.c.bf16 %v1437, %v1437
        %v1566 = vpack.c.bf16 %v1438, %v1438
        %v1567 = vpack.c.bf16 %v1439, %v1439
        %v1568 = vpack.c.bf16 %v1440, %v1440
        %v1569 = vpack.c.bf16 %v1441, %v1441
        %v1570 = vpack.c.bf16 %v1442, %v1442
        %v1571 = vpack.c.bf16 %v1443, %v1443
        %v1572 = vpack.c.bf16 %v1444, %v1444
        %v1573 = vpack.c.bf16 %v1445, %v1445
        %v1574 = vpack.c.bf16 %v1446, %v1446
        %v1575 = vpack.c.bf16 %v1447, %v1447
        %v1576 = vpack.c.bf16 %v1448, %v1448
        %v1577 = vpack.c.bf16 %v1449, %v1449
        %v1578 = vpack.c.bf16 %v1450, %v1450
        %v1579 = vpack.c.bf16 %v1451, %v1451
        %v1580 = vpack.c.bf16 %v1452, %v1452
        %v1581 = vpack.c.bf16 %v1453, %v1453
        %v1582 = vpack.c.bf16 %v1454, %v1454
        %v1583 = vpack.c.bf16 %v1455, %v1455
        %v1584 = vpack.c.bf16 %v1456, %v1456
        %v1585 = vpack.c.bf16 %v1457, %v1457
        %v1586 = vpack.c.bf16 %v1458, %v1458
        %v1587 = vpack.c.bf16 %v1459, %v1459
        %v1588 = vpack.c.bf16 %v1460, %v1460
        %v1589 = vpack.c.bf16 %v1461, %v1461
        %v1590 = vpack.c.bf16 %v1462, %v1462
        %v1591 = vpack.c.bf16 %v1463, %v1463
        %v1592 = vpack.c.bf16 %v1464, %v1464
        %v1593 = vpack.c.bf16 %v1465, %v1465
        %v1594 = vpack.c.bf16 %v1466, %v1466
        %v1595 = vpack.c.bf16 %v1467, %v1467
        %v1596 = vpack.c.bf16 %v1468, %v1468
        %v1597 = vpack.c.bf16 %v1469, %v1469
        %v1598 = vpack.c.bf16 %v1470, %v1470
        %v1599 = vpack.c.bf16 %v1471, %v1471
        %v1600 = vpack.c.bf16 %v1472, %v1472
        %v1601 = vpack.c.bf16 %v1473, %v1473
        %v1602 = vpack.c.bf16 %v1474, %v1474
        %v1603 = vpack.c.bf16 %v1475, %v1475
        %v1604 = vpack.c.bf16 %v1476, %v1476
        %v1605 = vpack.c.bf16 %v1477, %v1477
        %v1606 = vpack.c.bf16 %v1478, %v1478
        %v1607 = vpack.c.bf16 %v1479, %v1479
        %v1608 = vpack.c.bf16 %v1480, %v1480
        %v1609 = vpack.c.bf16 %v1481, %v1481
        %v1610 = vpack.c.bf16 %v1482, %v1482
        %v1611 = vpack.c.bf16 %v1483, %v1483
        %v1612 = vpack.c.bf16 %v1484, %v1484
        %v1613 = vpack.c.bf16 %v1485, %v1485
        %v1614 = vpack.c.bf16 %v1486, %v1486
        %v1615 = vpack.c.bf16 %v1487, %v1487
        %v1616 = vpack.c.bf16 %v1488, %v1488
        %v1617 = vpack.c.bf16 %v1489, %v1489
        %v1618 = vpack.c.bf16 %v1490, %v1490
        %v1619 = vpack.c.bf16 %v1491, %v1491
        %v1620 = vpack.c.bf16 %v1492, %v1492
        %v1621 = vpack.c.bf16 %v1493, %v1493
        %v1622 = vpack.c.bf16 %v1494, %v1494
        %v1623 = vpack.c.bf16 %v1495, %v1495
        %v1624 = vpack.c.bf16 %v1496, %v1496
        %v1625 = vpack.c.bf16 %v1497, %v1497
        %v1626 = vpack.c.bf16 %v1498, %v1498
        %v1627 = vpack.c.bf16 %v1499, %v1499
        %v1628 = vpack.c.bf16 %v1500, %v1500
        %v1629 = vpack.c.bf16 %v1501, %v1501
        %v1630 = vpack.c.bf16 %v1502, %v1502
        %v1631 = vpack.c.bf16 %v1503, %v1503
        %v1632 = vpack.c.bf16 %v1504, %v1504
        %v1633 = vpack.c.bf16 %v1505, %v1505
        %v1634 = vpack.c.bf16 %v1506, %v1506
        %v1635 = vpack.c.bf16 %v1507, %v1507
        %v1636 = vpack.c.bf16 %v1508, %v1508
        %v1637 = vpack.c.bf16 %v1509, %v1509
        %v1638 = vpack.c.bf16 %v1510, %v1510
        %v1639 = vpack.c.bf16 %v1511, %v1511
        %v1640 = vpack.c.bf16 %v1512, %v1512
        %v1641 = vpack.c.bf16 %v1513, %v1513
        %v1642 = vpack.c.bf16 %v1514, %v1514
        %v1643 = vpack.c.bf16 %v1515, %v1515
        %v1644 = vpack.c.bf16 %v1516, %v1516
        %v1645 = vpack.c.bf16 %v1517, %v1517
        %v1646 = vpack.c.bf16 %v1518, %v1518
        %v1647 = vpack.c.bf16 %v1519, %v1519
        %v1648 = vpack.c.bf16 %v1520, %v1520
        %v1649 = vpack.c.bf16 %v1521, %v1521
        %v1650 = vpack.c.bf16 %v1522, %v1522
        %v1651 = vpack.c.bf16 %v1523, %v1523
        %1652 = vst [vmem:[%s137] sm:$0xf] %v1524
        %1653 = vst [vmem:[%s137 + $0x4] sm:$0xf] %v1525
        %1654 = vst [vmem:[%s137 + $0x8] sm:$0xf] %v1526
        %1655 = vst [vmem:[%s137 + $0xc] sm:$0xf] %v1527
        %1656 = vst [vmem:[%s137 + $0x10] sm:$0xf] %v1528
        %1657 = vst [vmem:[%s137 + $0x14] sm:$0xf] %v1529
        %1658 = vst [vmem:[%s137 + $0x18] sm:$0xf] %v1530
        %1659 = vst [vmem:[%s137 + $0x1c] sm:$0xf] %v1531
        %1660 = vst [vmem:[%s137 + $0x20] sm:$0xf] %v1532
        %1661 = vst [vmem:[%s137 + $0x24] sm:$0xf] %v1533
        %1662 = vst [vmem:[%s137 + $0x28] sm:$0xf] %v1534
        %1663 = vst [vmem:[%s137 + $0x2c] sm:$0xf] %v1535
        %1664 = vst [vmem:[%s137 + $0x30] sm:$0xf] %v1536
        %1665 = vst [vmem:[%s137 + $0x34] sm:$0xf] %v1537
        %1666 = vst [vmem:[%s137 + $0x38] sm:$0xf] %v1538
        %1667 = vst [vmem:[%s137 + $0x3c] sm:$0xf] %v1539
        %1668 = vst [vmem:[%s137 + $0x40] sm:$0xf] %v1540
        %1669 = vst [vmem:[%s137 + $0x44] sm:$0xf] %v1541
        %1670 = vst [vmem:[%s137 + $0x48] sm:$0xf] %v1542
        %1671 = vst [vmem:[%s137 + $0x4c] sm:$0xf] %v1543
        %1672 = vst [vmem:[%s137 + $0x50] sm:$0xf] %v1544
        %1673 = vst [vmem:[%s137 + $0x54] sm:$0xf] %v1545
        %1674 = vst [vmem:[%s137 + $0x58] sm:$0xf] %v1546
        %1675 = vst [vmem:[%s137 + $0x5c] sm:$0xf] %v1547
        %1676 = vst [vmem:[%s137 + $0x60] sm:$0xf] %v1548
        %1677 = vst [vmem:[%s137 + $0x64] sm:$0xf] %v1549
        %1678 = vst [vmem:[%s137 + $0x68] sm:$0xf] %v1550
        %1679 = vst [vmem:[%s137 + $0x6c] sm:$0xf] %v1551
        %1680 = vst [vmem:[%s137 + $0x70] sm:$0xf] %v1552
        %1681 = vst [vmem:[%s137 + $0x74] sm:$0xf] %v1553
        %1682 = vst [vmem:[%s137 + $0x78] sm:$0xf] %v1554
        %1683 = vst [vmem:[%s137 + $0x7c] sm:$0xf] %v1555
        %1684 = vst [vmem:[%s137 + $0x80] sm:$0xf] %v1556
        %1685 = vst [vmem:[%s137 + $0x84] sm:$0xf] %v1557
        %1686 = vst [vmem:[%s137 + $0x88] sm:$0xf] %v1558
        %1687 = vst [vmem:[%s137 + $0x8c] sm:$0xf] %v1559
        %1688 = vst [vmem:[%s137 + $0x90] sm:$0xf] %v1560
        %1689 = vst [vmem:[%s137 + $0x94] sm:$0xf] %v1561
        %1690 = vst [vmem:[%s137 + $0x98] sm:$0xf] %v1562
        %1691 = vst [vmem:[%s137 + $0x9c] sm:$0xf] %v1563
        %1692 = vst [vmem:[%s137 + $0xa0] sm:$0xf] %v1564
        %1693 = vst [vmem:[%s137 + $0xa4] sm:$0xf] %v1565
        %1694 = vst [vmem:[%s137 + $0xa8] sm:$0xf] %v1566
        %1695 = vst [vmem:[%s137 + $0xac] sm:$0xf] %v1567
        %1696 = vst [vmem:[%s137 + $0xb0] sm:$0xf] %v1568
        %1697 = vst [vmem:[%s137 + $0xb4] sm:$0xf] %v1569
        %1698 = vst [vmem:[%s137 + $0xb8] sm:$0xf] %v1570
        %1699 = vst [vmem:[%s137 + $0xbc] sm:$0xf] %v1571
        %1700 = vst [vmem:[%s137 + $0xc0] sm:$0xf] %v1572
        %1701 = vst [vmem:[%s137 + $0xc4] sm:$0xf] %v1573
        %1702 = vst [vmem:[%s137 + $0xc8] sm:$0xf] %v1574
        %1703 = vst [vmem:[%s137 + $0xcc] sm:$0xf] %v1575
        %1704 = vst [vmem:[%s137 + $0xd0] sm:$0xf] %v1576
        %1705 = vst [vmem:[%s137 + $0xd4] sm:$0xf] %v1577
        %1706 = vst [vmem:[%s137 + $0xd8] sm:$0xf] %v1578
        %1707 = vst [vmem:[%s137 + $0xdc] sm:$0xf] %v1579
        %1708 = vst [vmem:[%s137 + $0xe0] sm:$0xf] %v1580
        %1709 = vst [vmem:[%s137 + $0xe4] sm:$0xf] %v1581
        %1710 = vst [vmem:[%s137 + $0xe8] sm:$0xf] %v1582
        %1711 = vst [vmem:[%s137 + $0xec] sm:$0xf] %v1583
        %1712 = vst [vmem:[%s137 + $0xf0] sm:$0xf] %v1584
        %1713 = vst [vmem:[%s137 + $0xf4] sm:$0xf] %v1585
        %1714 = vst [vmem:[%s137 + $0xf8] sm:$0xf] %v1586
        %1715 = vst [vmem:[%s137 + $0xfc] sm:$0xf] %v1587
        %1716 = vst [vmem:[%s137 + $0x100] sm:$0xf] %v1588
        %1717 = vst [vmem:[%s137 + $0x104] sm:$0xf] %v1589
        %1718 = vst [vmem:[%s137 + $0x108] sm:$0xf] %v1590
        %1719 = vst [vmem:[%s137 + $0x10c] sm:$0xf] %v1591
        %1720 = vst [vmem:[%s137 + $0x110] sm:$0xf] %v1592
        %1721 = vst [vmem:[%s137 + $0x114] sm:$0xf] %v1593
        %1722 = vst [vmem:[%s137 + $0x118] sm:$0xf] %v1594
        %1723 = vst [vmem:[%s137 + $0x11c] sm:$0xf] %v1595
        %1724 = vst [vmem:[%s137 + $0x120] sm:$0xf] %v1596
        %1725 = vst [vmem:[%s137 + $0x124] sm:$0xf] %v1597
        %1726 = vst [vmem:[%s137 + $0x128] sm:$0xf] %v1598
        %1727 = vst [vmem:[%s137 + $0x12c] sm:$0xf] %v1599
        %1728 = vst [vmem:[%s137 + $0x130] sm:$0xf] %v1600
        %1729 = vst [vmem:[%s137 + $0x134] sm:$0xf] %v1601
        %1730 = vst [vmem:[%s137 + $0x138] sm:$0xf] %v1602
        %1731 = vst [vmem:[%s137 + $0x13c] sm:$0xf] %v1603
        %1732 = vst [vmem:[%s137 + $0x140] sm:$0xf] %v1604
        %1733 = vst [vmem:[%s137 + $0x144] sm:$0xf] %v1605
        %1734 = vst [vmem:[%s137 + $0x148] sm:$0xf] %v1606
        %1735 = vst [vmem:[%s137 + $0x14c] sm:$0xf] %v1607
        %1736 = vst [vmem:[%s137 + $0x150] sm:$0xf] %v1608
        %1737 = vst [vmem:[%s137 + $0x154] sm:$0xf] %v1609
        %1738 = vst [vmem:[%s137 + $0x158] sm:$0xf] %v1610
        %1739 = vst [vmem:[%s137 + $0x15c] sm:$0xf] %v1611
        %1740 = vst [vmem:[%s137 + $0x160] sm:$0xf] %v1612
        %1741 = vst [vmem:[%s137 + $0x164] sm:$0xf] %v1613
        %1742 = vst [vmem:[%s137 + $0x168] sm:$0xf] %v1614
        %1743 = vst [vmem:[%s137 + $0x16c] sm:$0xf] %v1615
        %1744 = vst [vmem:[%s137 + $0x170] sm:$0xf] %v1616
        %1745 = vst [vmem:[%s137 + $0x174] sm:$0xf] %v1617
        %1746 = vst [vmem:[%s137 + $0x178] sm:$0xf] %v1618
        %1747 = vst [vmem:[%s137 + $0x17c] sm:$0xf] %v1619
        %1748 = vst [vmem:[%s137 + $0x180] sm:$0xf] %v1620
        %1749 = vst [vmem:[%s137 + $0x184] sm:$0xf] %v1621
        %1750 = vst [vmem:[%s137 + $0x188] sm:$0xf] %v1622
        %1751 = vst [vmem:[%s137 + $0x18c] sm:$0xf] %v1623
        %1752 = vst [vmem:[%s137 + $0x190] sm:$0xf] %v1624
        %1753 = vst [vmem:[%s137 + $0x194] sm:$0xf] %v1625
        %1754 = vst [vmem:[%s137 + $0x198] sm:$0xf] %v1626
        %1755 = vst [vmem:[%s137 + $0x19c] sm:$0xf] %v1627
        %1756 = vst [vmem:[%s137 + $0x1a0] sm:$0xf] %v1628
        %1757 = vst [vmem:[%s137 + $0x1a4] sm:$0xf] %v1629
        %1758 = vst [vmem:[%s137 + $0x1a8] sm:$0xf] %v1630
        %1759 = vst [vmem:[%s137 + $0x1ac] sm:$0xf] %v1631
        %1760 = vst [vmem:[%s137 + $0x1b0] sm:$0xf] %v1632
        %1761 = vst [vmem:[%s137 + $0x1b4] sm:$0xf] %v1633
        %1762 = vst [vmem:[%s137 + $0x1b8] sm:$0xf] %v1634
        %1763 = vst [vmem:[%s137 + $0x1bc] sm:$0xf] %v1635
        %1764 = vst [vmem:[%s137 + $0x1c0] sm:$0xf] %v1636
        %1765 = vst [vmem:[%s137 + $0x1c4] sm:$0xf] %v1637
        %1766 = vst [vmem:[%s137 + $0x1c8] sm:$0xf] %v1638
        %1767 = vst [vmem:[%s137 + $0x1cc] sm:$0xf] %v1639
        %1768 = vst [vmem:[%s137 + $0x1d0] sm:$0xf] %v1640
        %1769 = vst [vmem:[%s137 + $0x1d4] sm:$0xf] %v1641
        %1770 = vst [vmem:[%s137 + $0x1d8] sm:$0xf] %v1642
        %1771 = vst [vmem:[%s137 + $0x1dc] sm:$0xf] %v1643
        %1772 = vst [vmem:[%s137 + $0x1e0] sm:$0xf] %v1644
        %1773 = vst [vmem:[%s137 + $0x1e4] sm:$0xf] %v1645
        %1774 = vst [vmem:[%s137 + $0x1e8] sm:$0xf] %v1646
        %1775 = vst [vmem:[%s137 + $0x1ec] sm:$0xf] %v1647
        %1776 = vst [vmem:[%s137 + $0x1f0] sm:$0xf] %v1648
        %1777 = vst [vmem:[%s137 + $0x1f4] sm:$0xf] %v1649
        %1778 = vst [vmem:[%s137 + $0x1f8] sm:$0xf] %v1650
        %1779 = vst [vmem:[%s137 + $0x1fc] sm:$0xf] %v1651
        %s1780 = sand.u32 %s71, 1
        %s1781 = scalar_lea.sflag [#allocation3], %s1780
        %s1782 = sand.u32 %s71, 1
        %s1783 = smul.addr %s1782, 512
        %s1784 = scalar_lea.vmem [#allocation2], %s1783
        // Predicated region
        $region29: #{tpu_custom_call.1} parent=27 // pred_check
          %p1785 = pneg %p81
        $region30: #{tpu_custom_call.1} parent=27 // pred_check_branch
          %1787 = sbr.rel (%p1785) target = $region32
        $region31: #{tpu_custom_call.1} parent=27 // pred_region
          %s1788 = smul.u32 128, %s16
          %1790 = vsyncadd %s1781, 0
          %s1791 = smul.addr %s1788, 4
          %s1792 = scalar_lea.hbm %s2, %s1791
          %s1793 = sshll.u32 %s1784, 4
          %s1794 = int_to_ptr.vmem [resolvable:$true] %s1793
          %s1795 = sshll.u32 %s1792, 4
          %s1796 = int_to_ptr.hbm [resolvable:$true] %s1795
          %1801 = dma.vmem_to_hbm [thread:$0]  %s1794, 8192, %s1796, %s1781, 64, 64, 4
        $region32: #{tpu_custom_call.1} parent=27 // pred_fallthru
          _
      $region28: #{tpu_custom_call.1} parent=5 // pred_fallthru
        _
      %p1802 = scmp.le.s32.totalorder 2, %s11
      // Predicated region
      $region33: #{tpu_custom_call.1} parent=5 // pred_check
        %p1803 = pneg %p1802
      $region34: #{tpu_custom_call.1} parent=5 // pred_check_branch
        %1805 = sbr.rel (%p1803) target = $region36
      $region35: #{tpu_custom_call.1} parent=5 // pred_region
        %s1806 = ssub.s32 %s11, 2
        // Predicated region
        $region37: #{tpu_custom_call.1} parent=35 // pred_check
          %p1807 = pneg %p87
        $region38: #{tpu_custom_call.1} parent=35 // pred_check_branch
          %1809 = sbr.rel (%p1807) target = $region40
        $region39: #{tpu_custom_call.1} parent=35 // pred_region
          %s1810 = sand.u32 %s72, 1
          %s1811 = scalar_lea.sflag [#allocation3], %s1810
          %s1812 = sand.u32 %s72, 1
          %s1813 = smul.addr %s1812, 512
          %s1814 = scalar_lea.vmem [#allocation2], %s1813
          %1816 = dma.done %s1811, 8192
        $region40: #{tpu_custom_call.1} parent=35 // pred_fallthru
          _
      $region36: #{tpu_custom_call.1} parent=5 // pred_fallthru
        _
    $region6: #{tpu_custom_call.1} parent=1 // loop_footer
      %s15 = sadd.s32 1, %s11
    $region7: #{tpu_custom_call.1} parent=1 // loop_footer_branch
      %10 = sbr.rel target = $region3
    $region8: #{tpu_custom_call.1} parent=1 // loop_exit
      _
    %1817 = vsyncpa [#allocation3], 1
    %s1818 = scalar_lea.sflag [#allocation3], 1
    %1819 = vsyncpa %s1818, 1

</llo_original>
